<compile_context>
chip_gen: v7x
topology: tpu7x:2x2x1
jax: 0.10.0
libtpu: 0.0.40
codegen_flags: <defaults>
</compile_context>

<pallas_src>
import functools
import math

import jax
import jax.numpy as jnp
from jax import lax
from jax.experimental import pallas as pl
from jax.experimental.pallas import tpu as pltpu


# ----------------------------------------------------------------------------
# Kernel 1: fused LightRFB (one frame per grid step)
# ----------------------------------------------------------------------------

def _rfb_kernel(x_ref, wbr_ref, dw1_ref, dw2_ref, wcat_ref, o_ref,
                *, H, W, cm, pad, d1, d2):
    # x_ref: (1, Hp, Wp, Cin) bf16, spatially zero-padded halo (pad on H/W,
    #        W additionally padded so Wp % 8 == 0 -> layout-trivial reshapes).
    x = x_ref[0]
    Hp, Wp, Cin = x.shape

    # Branch 1x1 convs [b0 | b1 | b2] as ONE MXU matmul + ReLU over the padded
    # footprint.  Zero halo rows/cols stay zero through the bias-free 1x1 + ReLU,
    # so they act as 'same' padding for the depthwise convs below.
    # (Kept full-footprint: one MXU pass + trivial reshape beats splitting it.)
    y = jnp.dot(x.reshape(Hp * Wp, Cin), wbr_ref[...],
                preferred_element_type=jnp.float32)
    y = jnp.maximum(y, 0.0).reshape(Hp, Wp, 3 * cm)          # (Hp, Wp, 3*cm) f32

    def dwconv(lo, dw_ref, d):
        dw = dw_ref[...]                                      # (9, cm) f32
        base = pad - d
        # Hoist the misaligned sublane (W-axis) windows: 3 slices per branch
        # instead of 9; the remaining H-axis slices are on an untiled leading
        # dim and are free.
        cols = [y[:, base + tx * d: base + tx * d + W, lo: lo + cm]
                for tx in range(3)]                           # each (Hp, W, cm)
        acc = jnp.zeros((H, W, cm), jnp.float32)
        for ty in range(3):
            r0 = base + ty * d
            for tx in range(3):
                acc = acc + cols[tx][r0: r0 + H, :, :] * dw[3 * ty + tx, :]
        return jnp.maximum(acc, 0.0)

    b0 = y[pad: pad + H, pad: pad + W, 0:cm]                  # (H, W, cm)
    c1 = dwconv(cm, dw1_ref, d1)
    c2 = dwconv(2 * cm, dw2_ref, d2)

    # Branch concat along lanes (3*cm lanes) + final 1x1 conv as ONE matmul.
    cat = jnp.concatenate([b0, c1, c2], axis=-1)              # (H, W, 3*cm) f32
    out = jnp.dot(cat.reshape(H * W, 3 * cm).astype(jnp.bfloat16), wcat_ref[...],
                  preferred_element_type=jnp.float32)
    out = jnp.maximum(out, 0.0).reshape(H, W, -1)
    o_ref[0] = out.astype(o_ref.dtype)


def light_rfb_fused(p, x):
    """x: (N, H, W, Cin) f32 -> (N, H, W, Cout) bf16.  One pallas_call."""
    N, H, W, Cin = x.shape
    cm = p["dw1"].shape[-1]
    co = p["cat_w"].shape[-1]
    pad = 3                                      # max dilation of the dw branches
    # pad W up to a multiple of 8 so in-kernel flatten/unflatten stays trivial
    pad_r = pad + ((-(W + 2 * pad)) % 8)
    xp = jnp.pad(x.astype(jnp.bfloat16),
                 ((0, 0), (pad, pad), (pad, pad_r), (0, 0)))
    Hp, Wp = H + 2 * pad, W + pad + pad_r

    return pl.pallas_call(
        functools.partial(_rfb_kernel, H=H, W=W, cm=cm, pad=pad, d1=1, d2=3),
        out_shape=jax.ShapeDtypeStruct((N, H, W, co), jnp.bfloat16),
        grid=(N,),
        in_specs=[
            pl.BlockSpec((1, Hp, Wp, Cin), lambda i: (i, 0, 0, 0)),
            pl.BlockSpec((Cin, 3 * cm), lambda i: (0, 0)),
            pl.BlockSpec((9, cm), lambda i: (0, 0)),
            pl.BlockSpec((9, cm), lambda i: (0, 0)),
            pl.BlockSpec((3 * cm, co), lambda i: (0, 0)),
        ],
        out_specs=pl.BlockSpec((1, H, W, co), lambda i: (i, 0, 0, 0)),
        compiler_params=pltpu.CompilerParams(
            dimension_semantics=("parallel",),
            vmem_limit_bytes=32 * 1024 * 1024),
    )(xp, p["br_w"], p["dw1"], p["dw2"], p["cat_w"])


# ----------------------------------------------------------------------------
# Kernel 2: fused NS_Block(fuse1) + NS_Block(fuse2) + excitation + skip
# ----------------------------------------------------------------------------

def _ns_excite_kernel(*refs, nh, dk, skip):
    if skip:
        (fw_ref, xs_ref, wqkv1_ref, wo1_ref, wqkv2_ref, wo2_ref,
         wex_ref, bex_ref, g_ref, be_ref, o_ref) = refs
    else:
        (fw_ref, wqkv1_ref, wo1_ref, wqkv2_ref, wo2_ref,
         wex_ref, bex_ref, g_ref, be_ref, o_ref) = refs
        xs_ref = None

    D = nh * dk
    fw_bf = fw_ref[0]                            # (L, C) bf16
    fw = fw_bf.astype(jnp.float32)

    def mha(x_bf, wqkv_ref, wo_ref):
        # Single fused QKV projection; 1/sqrt(dk) is pre-folded into the Q
        # columns of wqkv, so no (L, L) score scaling is needed.
        qkv = jnp.dot(x_bf, wqkv_ref[...],
                      preferred_element_type=jnp.float32)      # (L, 3*D)
        heads = []
        for h in range(nh):
            q = qkv[:, h * dk:(h + 1) * dk].astype(jnp.bfloat16)
            k = qkv[:, D + h * dk:D + (h + 1) * dk].astype(jnp.bfloat16)
            v = qkv[:, 2 * D + h * dk:2 * D + (h + 1) * dk].astype(jnp.bfloat16)
            # scores (L, L): softmax stats in f32.
            s = lax.dot_general(q, k, (((1,), (1,)), ((), ())),
                                preferred_element_type=jnp.float32)
            s = s - jnp.max(s, axis=-1, keepdims=True)
            p = jnp.exp(s)
            # approx reciprocal runs on the EUP slot (free); ~1e-3 rel. error.
            p = p * pl.reciprocal(jnp.sum(p, axis=-1, keepdims=True), approx=True)
            heads.append(jnp.dot(p.astype(jnp.bfloat16), v,
                                 preferred_element_type=jnp.float32))   # (L, dk)
        # Concatenate heads, then ONE output-projection matmul (was nh matmuls).
        o_all = jnp.concatenate(heads, axis=-1).astype(jnp.bfloat16)    # (L, D)
        return jnp.dot(o_all, wo_ref[...], preferred_element_type=jnp.float32)

    # fuse1 / fuse2 residual chain (residual adds in f32).
    fw2 = mha(fw_bf, wqkv1_ref, wo1_ref) + fw                   # attn(fw) + fw
    fw3 = mha(fw2.astype(jnp.bfloat16), wqkv2_ref, wo2_ref) + fw2 + fw

    # Excitation epilogue: Linear + LayerNorm + ReLU (+ skip), fused.
    y = jnp.dot(fw3.astype(jnp.bfloat16), wex_ref[...],
                preferred_element_type=jnp.float32) + bex_ref[...]
    mu = jnp.mean(y, axis=-1, keepdims=True)
    var = jnp.mean(jnp.square(y - mu), axis=-1, keepdims=True)
    out = jnp.maximum((y - mu) * lax.rsqrt(var + 1e-5) * g_ref[...] + be_ref[...],
                      0.0)
    if skip:
        out = out + xs_ref[0]
    o_ref[0] = out


def ns_excite_fused(p1, p2, pexc, fw, x_skip=None):
    """fw: (B, L, C) bf16 tokens -> (B, L, filters) f32.  One step per batch."""
    B, L, C = fw.shape
    nh, dk = p1["n_heads"], p1["dk"]
    D = nh * dk
    Nf = pexc["w"].shape[1]
    skip = x_skip is not None

    in_specs = [pl.BlockSpec((1, L, C), lambda b: (b, 0, 0))]
    args = [fw]
    if skip:
        in_specs.append(pl.BlockSpec((1, L, Nf), lambda b: (b, 0, 0)))
        args.append(x_skip)
    in_specs += [
        pl.BlockSpec((C, 3 * D), lambda b: (0, 0)),
        pl.BlockSpec((D, C), lambda b: (0, 0)),
        pl.BlockSpec((C, 3 * D), lambda b: (0, 0)),
        pl.BlockSpec((D, C), lambda b: (0, 0)),
        pl.BlockSpec((C, Nf), lambda b: (0, 0)),
        pl.BlockSpec((1, Nf), lambda b: (0, 0)),
        pl.BlockSpec((1, Nf), lambda b: (0, 0)),
        pl.BlockSpec((1, Nf), lambda b: (0, 0)),
    ]
    args += [p1["wqkv"], p1["wo"], p2["wqkv"], p2["wo"],
             pexc["w"], pexc["b"].reshape(1, Nf),
             pexc["gamma"].reshape(1, Nf), pexc["beta"].reshape(1, Nf)]

    return pl.pallas_call(
        functools.partial(_ns_excite_kernel, nh=nh, dk=dk, skip=skip),
        out_shape=jax.ShapeDtypeStruct((B, L, Nf), jnp.float32),
        grid=(B,),
        in_specs=in_specs,
        out_specs=pl.BlockSpec((1, L, Nf), lambda b: (b, 0, 0)),
        compiler_params=pltpu.CompilerParams(
            dimension_semantics=("parallel",),
            vmem_limit_bytes=32 * 1024 * 1024),
    )(*args)


# ----------------------------------------------------------------------------
# Parameter initialization (deterministic, synthetic; weights pre-cast to bf16)
# ----------------------------------------------------------------------------

def _w(key, shape, scale=0.1):
    return jax.random.normal(key, shape, jnp.float32) * scale


def init_ns_block(key, c, n_heads):
    dk = max(c // n_heads, 1)
    scale = 1.0 / math.sqrt(dk)
    ks = jax.random.split(key, 4)
    wq = _w(ks[0], (c, n_heads * dk))
    wk = _w(ks[1], (c, n_heads * dk))
    wv = _w(ks[2], (c, n_heads * dk))
    wo = _w(ks[3], (n_heads * dk, c))
    return {
        "n_heads": n_heads,
        "dk": dk,
        # Q/K/V fused into one weight; 1/sqrt(dk) folded into the Q columns.
        "wqkv": jnp.concatenate([wq * scale, wk, wv], axis=1).astype(jnp.bfloat16),
        "wo": wo.astype(jnp.bfloat16),
    }


def init_fusion_nsa_single(key, filters, n_heads):
    c_mid = filters // 4
    c_out = filters // 8
    ks = jax.random.split(key, 8)
    return {
        "rfb": {
            # fused branch 1x1 weights [b0 | b1 | b2], depthwise taps as (9, c_mid)
            "br_w": _w(ks[0], (filters, 3 * c_mid)).astype(jnp.bfloat16),
            "dw1": _w(ks[1], (9, c_mid)),
            "dw2": _w(ks[2], (9, c_mid)),
            "cat_w": _w(ks[3], (3 * c_mid, c_out)).astype(jnp.bfloat16),
        },
        "fuse1": init_ns_block(ks[4], c_out, n_heads),
        "fuse2": init_ns_block(ks[5], c_out, n_heads),
        "exc": {
            "w": _w(ks[6], (c_out, filters)).astype(jnp.bfloat16),
            "b": _w(ks[7], (filters,)),
            "gamma": jnp.ones((filters,), jnp.float32),
            "beta": jnp.zeros((filters,), jnp.float32),
        },
    }


# ----------------------------------------------------------------------------
# Forward passes (thin XLA glue around the two fused Pallas kernels)
# ----------------------------------------------------------------------------

def fusion_nsa_single_fwd(p, x, skip_connection=True):
    # x: (B, T, H, W, C) f32
    B, T, H, W, C = x.shape
    N = B * T
    fw = light_rfb_fused(p["rfb"], x.reshape(N, H, W, C))        # (N, H, W, c8) bf16
    c8 = fw.shape[-1]
    L = T * H * W
    fw_seq = fw.reshape(B, L, c8)                                # metadata-only reshape
    x_skip = x.reshape(B, L, C) if skip_connection else None
    out = ns_excite_fused(p["fuse1"], p["fuse2"], p["exc"], fw_seq, x_skip)
    return out.reshape(B, T, H, W, C)


def temporal2spatial(t):
    return t.reshape((-1,) + t.shape[2:])


def fusion_nsa_fwd(params_list, xs, skip_connection=True):
    out = []
    if len(params_list) == 1:
        out += [temporal2spatial(t) for t in xs[:-1]]
        out.append(temporal2spatial(
            fusion_nsa_single_fwd(params_list[0], xs[-1], skip_connection)))
    else:
        for p, t in zip(params_list, xs):
            out.append(temporal2spatial(
                fusion_nsa_single_fwd(p, t, skip_connection)))
    return out


# ----------------------------------------------------------------------------
# Demo
# ----------------------------------------------------------------------------

if __name__ == "__main__":
    key = jax.random.PRNGKey(0)
    k0, k1, kp = jax.random.split(key, 3)

    filters = [64]
    n_heads = 2
    heights = [8]
    widths = [8]

    params = [init_fusion_nsa_single(kp, filters[0], n_heads)]

    # Input list in channels-last layout (B, T, H, W, C); only x[-1] is fused.
    x0 = jax.random.normal(k0, (2, 3, 16, 16, 32), jnp.float32)
    x1 = jax.random.normal(k1, (2, 3, heights[0], widths[0], filters[0]), jnp.float32)

    outs = fusion_nsa_fwd(params, [x0, x1], skip_connection=True)
    for o in outs:
        jax.block_until_ready(o)

    assert outs[0].shape == (6, 16, 16, 32)
    assert outs[1].shape == (6, 8, 8, 64)
    assert all(bool(jnp.isfinite(o).all()) for o in outs)
    print("KERNEL_OK")
</pallas_src>

<mosaic_0001>
module attributes {stable_mosaic.version = 11 : i64} {
  func.func @_rfb_kernel(%arg0: i32, %arg1: memref<1x14x16x64xbf16, #tpu.memory_space<vmem>>, %arg2: memref<64x48xbf16, #tpu.memory_space<vmem>>, %arg3: memref<9x16xf32, #tpu.memory_space<vmem>>, %arg4: memref<9x16xf32, #tpu.memory_space<vmem>>, %arg5: memref<48x8xbf16, #tpu.memory_space<vmem>>, %arg6: memref<1x8x8x8xbf16, #tpu.memory_space<vmem>>) attributes {dimension_semantics = [#tpu.dimension_semantics<parallel>], iteration_bounds = array<i64: 6>, scalar_prefetch = 0 : i64, scratch_operands = 0 : i64, tpu.core_type = #tpu.core_type<tc>, window_params = [{transform_indices = @transform_0, window_bounds = array<i64: 1, 14, 16, 64>}, {pipeline_mode = #tpu.pipeline_mode<synchronous>, transform_indices = @transform_1, window_bounds = array<i64: 64, 48>}, {pipeline_mode = #tpu.pipeline_mode<synchronous>, transform_indices = @transform_2, window_bounds = array<i64: 9, 16>}, {pipeline_mode = #tpu.pipeline_mode<synchronous>, transform_indices = @transform_3, window_bounds = array<i64: 9, 16>}, {pipeline_mode = #tpu.pipeline_mode<synchronous>, transform_indices = @transform_4, window_bounds = array<i64: 48, 8>}, {transform_indices = @transform_5, window_bounds = array<i64: 1, 8, 8, 8>}]} {
    %c0 = arith.constant 0 : index
    %c0_0 = arith.constant 0 : index
    %c0_1 = arith.constant 0 : index
    %c0_2 = arith.constant 0 : index
    %0 = vector.load %arg1[%c0, %c0_0, %c0_1, %c0_2] : memref<1x14x16x64xbf16, #tpu.memory_space<vmem>>, vector<1x14x16x64xbf16>
    %1 = vector.shape_cast %0 : vector<1x14x16x64xbf16> to vector<14x16x64xbf16>
    %2 = vector.shape_cast %1 : vector<14x16x64xbf16> to vector<224x64xbf16>
    %c0_3 = arith.constant 0 : index
    %c0_4 = arith.constant 0 : index
    %3 = vector.load %arg2[%c0_3, %c0_4] : memref<64x48xbf16, #tpu.memory_space<vmem>>, vector<64x48xbf16>
    %cst = arith.constant dense<0.000000e+00> : vector<224x48xf32>
    %4 = tpu.matmul %2, %3, %cst {dimension_numbers = #tpu.dot_dimension_numbers<[1], [0], [0], [1], [0, 0, 1, 1], [], []>} : vector<224x64xbf16>, vector<64x48xbf16>, vector<224x48xf32> -> vector<224x48xf32>
    %cst_5 = arith.constant 0.000000e+00 : f32
    %5 = vector.broadcast %cst_5 : f32 to vector<224x48xf32>
    %6 = arith.maximumf %4, %5 : vector<224x48xf32>
    %7 = vector.shape_cast %6 : vector<224x48xf32> to vector<14x16x48xf32>
    %8 = vector.extract_strided_slice %7 {offsets = [3, 3, 0], sizes = [8, 8, 16], strides = [1, 1, 1]} : vector<14x16x48xf32> to vector<8x8x16xf32>
    %c0_6 = arith.constant 0 : index
    %c0_7 = arith.constant 0 : index
    %9 = vector.load %arg3[%c0_6, %c0_7] : memref<9x16xf32, #tpu.memory_space<vmem>>, vector<9x16xf32>
    %10 = vector.extract_strided_slice %7 {offsets = [0, 2, 16], sizes = [14, 8, 16], strides = [1, 1, 1]} : vector<14x16x48xf32> to vector<14x8x16xf32>
    %11 = vector.extract_strided_slice %7 {offsets = [0, 3, 16], sizes = [14, 8, 16], strides = [1, 1, 1]} : vector<14x16x48xf32> to vector<14x8x16xf32>
    %12 = vector.extract_strided_slice %7 {offsets = [0, 4, 16], sizes = [14, 8, 16], strides = [1, 1, 1]} : vector<14x16x48xf32> to vector<14x8x16xf32>
    %cst_8 = arith.constant 0.000000e+00 : f32
    %13 = vector.broadcast %cst_8 : f32 to vector<8x8x16xf32>
    %14 = vector.extract_strided_slice %10 {offsets = [2, 0, 0], sizes = [8, 8, 16], strides = [1, 1, 1]} : vector<14x8x16xf32> to vector<8x8x16xf32>
    %15 = vector.extract_strided_slice %9 {offsets = [0, 0], sizes = [1, 16], strides = [1, 1]} : vector<9x16xf32> to vector<1x16xf32>
    %16 = vector.shape_cast %15 : vector<1x16xf32> to vector<16xf32>
    %17 = vector.shape_cast %16 : vector<16xf32> to vector<1x1x16xf32>
    %18 = vector.broadcast %17 : vector<1x1x16xf32> to vector<8x8x16xf32>
    %19 = arith.mulf %14, %18 : vector<8x8x16xf32>
    %20 = arith.addf %13, %19 : vector<8x8x16xf32>
    %21 = vector.extract_strided_slice %11 {offsets = [2, 0, 0], sizes = [8, 8, 16], strides = [1, 1, 1]} : vector<14x8x16xf32> to vector<8x8x16xf32>
    %22 = vector.extract_strided_slice %9 {offsets = [1, 0], sizes = [1, 16], strides = [1, 1]} : vector<9x16xf32> to vector<1x16xf32>
    %23 = vector.shape_cast %22 : vector<1x16xf32> to vector<16xf32>
    %24 = vector.shape_cast %23 : vector<16xf32> to vector<1x1x16xf32>
    %25 = vector.broadcast %24 : vector<1x1x16xf32> to vector<8x8x16xf32>
    %26 = arith.mulf %21, %25 : vector<8x8x16xf32>
    %27 = arith.addf %20, %26 : vector<8x8x16xf32>
    %28 = vector.extract_strided_slice %12 {offsets = [2, 0, 0], sizes = [8, 8, 16], strides = [1, 1, 1]} : vector<14x8x16xf32> to vector<8x8x16xf32>
    %29 = vector.extract_strided_slice %9 {offsets = [2, 0], sizes = [1, 16], strides = [1, 1]} : vector<9x16xf32> to vector<1x16xf32>
    %30 = vector.shape_cast %29 : vector<1x16xf32> to vector<16xf32>
    %31 = vector.shape_cast %30 : vector<16xf32> to vector<1x1x16xf32>
    %32 = vector.broadcast %31 : vector<1x1x16xf32> to vector<8x8x16xf32>
    %33 = arith.mulf %28, %32 : vector<8x8x16xf32>
    %34 = arith.addf %27, %33 : vector<8x8x16xf32>
    %35 = vector.extract_strided_slice %10 {offsets = [3, 0, 0], sizes = [8, 8, 16], strides = [1, 1, 1]} : vector<14x8x16xf32> to vector<8x8x16xf32>
    %36 = vector.extract_strided_slice %9 {offsets = [3, 0], sizes = [1, 16], strides = [1, 1]} : vector<9x16xf32> to vector<1x16xf32>
    %37 = vector.shape_cast %36 : vector<1x16xf32> to vector<16xf32>
    %38 = vector.shape_cast %37 : vector<16xf32> to vector<1x1x16xf32>
    %39 = vector.broadcast %38 : vector<1x1x16xf32> to vector<8x8x16xf32>
    %40 = arith.mulf %35, %39 : vector<8x8x16xf32>
    %41 = arith.addf %34, %40 : vector<8x8x16xf32>
    %42 = vector.extract_strided_slice %11 {offsets = [3, 0, 0], sizes = [8, 8, 16], strides = [1, 1, 1]} : vector<14x8x16xf32> to vector<8x8x16xf32>
    %43 = vector.extract_strided_slice %9 {offsets = [4, 0], sizes = [1, 16], strides = [1, 1]} : vector<9x16xf32> to vector<1x16xf32>
    %44 = vector.shape_cast %43 : vector<1x16xf32> to vector<16xf32>
    %45 = vector.shape_cast %44 : vector<16xf32> to vector<1x1x16xf32>
    %46 = vector.broadcast %45 : vector<1x1x16xf32> to vector<8x8x16xf32>
    %47 = arith.mulf %42, %46 : vector<8x8x16xf32>
    %48 = arith.addf %41, %47 : vector<8x8x16xf32>
    %49 = vector.extract_strided_slice %12 {offsets = [3, 0, 0], sizes = [8, 8, 16], strides = [1, 1, 1]} : vector<14x8x16xf32> to vector<8x8x16xf32>
    %50 = vector.extract_strided_slice %9 {offsets = [5, 0], sizes = [1, 16], strides = [1, 1]} : vector<9x16xf32> to vector<1x16xf32>
    %51 = vector.shape_cast %50 : vector<1x16xf32> to vector<16xf32>
    %52 = vector.shape_cast %51 : vector<16xf32> to vector<1x1x16xf32>
    %53 = vector.broadcast %52 : vector<1x1x16xf32> to vector<8x8x16xf32>
    %54 = arith.mulf %49, %53 : vector<8x8x16xf32>
    %55 = arith.addf %48, %54 : vector<8x8x16xf32>
    %56 = vector.extract_strided_slice %10 {offsets = [4, 0, 0], sizes = [8, 8, 16], strides = [1, 1, 1]} : vector<14x8x16xf32> to vector<8x8x16xf32>
    %57 = vector.extract_strided_slice %9 {offsets = [6, 0], sizes = [1, 16], strides = [1, 1]} : vector<9x16xf32> to vector<1x16xf32>
    %58 = vector.shape_cast %57 : vector<1x16xf32> to vector<16xf32>
    %59 = vector.shape_cast %58 : vector<16xf32> to vector<1x1x16xf32>
    %60 = vector.broadcast %59 : vector<1x1x16xf32> to vector<8x8x16xf32>
    %61 = arith.mulf %56, %60 : vector<8x8x16xf32>
    %62 = arith.addf %55, %61 : vector<8x8x16xf32>
    %63 = vector.extract_strided_slice %11 {offsets = [4, 0, 0], sizes = [8, 8, 16], strides = [1, 1, 1]} : vector<14x8x16xf32> to vector<8x8x16xf32>
    %64 = vector.extract_strided_slice %9 {offsets = [7, 0], sizes = [1, 16], strides = [1, 1]} : vector<9x16xf32> to vector<1x16xf32>
    %65 = vector.shape_cast %64 : vector<1x16xf32> to vector<16xf32>
    %66 = vector.shape_cast %65 : vector<16xf32> to vector<1x1x16xf32>
    %67 = vector.broadcast %66 : vector<1x1x16xf32> to vector<8x8x16xf32>
    %68 = arith.mulf %63, %67 : vector<8x8x16xf32>
    %69 = arith.addf %62, %68 : vector<8x8x16xf32>
    %70 = vector.extract_strided_slice %12 {offsets = [4, 0, 0], sizes = [8, 8, 16], strides = [1, 1, 1]} : vector<14x8x16xf32> to vector<8x8x16xf32>
    %71 = vector.extract_strided_slice %9 {offsets = [8, 0], sizes = [1, 16], strides = [1, 1]} : vector<9x16xf32> to vector<1x16xf32>
    %72 = vector.shape_cast %71 : vector<1x16xf32> to vector<16xf32>
    %73 = vector.shape_cast %72 : vector<16xf32> to vector<1x1x16xf32>
    %74 = vector.broadcast %73 : vector<1x1x16xf32> to vector<8x8x16xf32>
    %75 = arith.mulf %70, %74 : vector<8x8x16xf32>
    %76 = arith.addf %69, %75 : vector<8x8x16xf32>
    %cst_9 = arith.constant 0.000000e+00 : f32
    %77 = vector.broadcast %cst_9 : f32 to vector<8x8x16xf32>
    %78 = arith.maximumf %76, %77 : vector<8x8x16xf32>
    %c0_10 = arith.constant 0 : index
    %c0_11 = arith.constant 0 : index
    %79 = vector.load %arg4[%c0_10, %c0_11] : memref<9x16xf32, #tpu.memory_space<vmem>>, vector<9x16xf32>
    %80 = vector.extract_strided_slice %7 {offsets = [0, 0, 32], sizes = [14, 8, 16], strides = [1, 1, 1]} : vector<14x16x48xf32> to vector<14x8x16xf32>
    %81 = vector.extract_strided_slice %7 {offsets = [0, 3, 32], sizes = [14, 8, 16], strides = [1, 1, 1]} : vector<14x16x48xf32> to vector<14x8x16xf32>
    %82 = vector.extract_strided_slice %7 {offsets = [0, 6, 32], sizes = [14, 8, 16], strides = [1, 1, 1]} : vector<14x16x48xf32> to vector<14x8x16xf32>
    %cst_12 = arith.constant 0.000000e+00 : f32
    %83 = vector.broadcast %cst_12 : f32 to vector<8x8x16xf32>
    %84 = vector.extract_strided_slice %80 {offsets = [0, 0, 0], sizes = [8, 8, 16], strides = [1, 1, 1]} : vector<14x8x16xf32> to vector<8x8x16xf32>
    %85 = vector.extract_strided_slice %79 {offsets = [0, 0], sizes = [1, 16], strides = [1, 1]} : vector<9x16xf32> to vector<1x16xf32>
    %86 = vector.shape_cast %85 : vector<1x16xf32> to vector<16xf32>
    %87 = vector.shape_cast %86 : vector<16xf32> to vector<1x1x16xf32>
    %88 = vector.broadcast %87 : vector<1x1x16xf32> to vector<8x8x16xf32>
    %89 = arith.mulf %84, %88 : vector<8x8x16xf32>
    %90 = arith.addf %83, %89 : vector<8x8x16xf32>
    %91 = vector.extract_strided_slice %81 {offsets = [0, 0, 0], sizes = [8, 8, 16], strides = [1, 1, 1]} : vector<14x8x16xf32> to vector<8x8x16xf32>
    %92 = vector.extract_strided_slice %79 {offsets = [1, 0], sizes = [1, 16], strides = [1, 1]} : vector<9x16xf32> to vector<1x16xf32>
    %93 = vector.shape_cast %92 : vector<1x16xf32> to vector<16xf32>
    %94 = vector.shape_cast %93 : vector<16xf32> to vector<1x1x16xf32>
    %95 = vector.broadcast %94 : vector<1x1x16xf32> to vector<8x8x16xf32>
    %96 = arith.mulf %91, %95 : vector<8x8x16xf32>
    %97 = arith.addf %90, %96 : vector<8x8x16xf32>
    %98 = vector.extract_strided_slice %82 {offsets = [0, 0, 0], sizes = [8, 8, 16], strides = [1, 1, 1]} : vector<14x8x16xf32> to vector<8x8x16xf32>
    %99 = vector.extract_strided_slice %79 {offsets = [2, 0], sizes = [1, 16], strides = [1, 1]} : vector<9x16xf32> to vector<1x16xf32>
    %100 = vector.shape_cast %99 : vector<1x16xf32> to vector<16xf32>
    %101 = vector.shape_cast %100 : vector<16xf32> to vector<1x1x16xf32>
    %102 = vector.broadcast %101 : vector<1x1x16xf32> to vector<8x8x16xf32>
    %103 = arith.mulf %98, %102 : vector<8x8x16xf32>
    %104 = arith.addf %97, %103 : vector<8x8x16xf32>
    %105 = vector.extract_strided_slice %80 {offsets = [3, 0, 0], sizes = [8, 8, 16], strides = [1, 1, 1]} : vector<14x8x16xf32> to vector<8x8x16xf32>
    %106 = vector.extract_strided_slice %79 {offsets = [3, 0], sizes = [1, 16], strides = [1, 1]} : vector<9x16xf32> to vector<1x16xf32>
    %107 = vector.shape_cast %106 : vector<1x16xf32> to vector<16xf32>
    %108 = vector.shape_cast %107 : vector<16xf32> to vector<1x1x16xf32>
    %109 = vector.broadcast %108 : vector<1x1x16xf32> to vector<8x8x16xf32>
    %110 = arith.mulf %105, %109 : vector<8x8x16xf32>
    %111 = arith.addf %104, %110 : vector<8x8x16xf32>
    %112 = vector.extract_strided_slice %81 {offsets = [3, 0, 0], sizes = [8, 8, 16], strides = [1, 1, 1]} : vector<14x8x16xf32> to vector<8x8x16xf32>
    %113 = vector.extract_strided_slice %79 {offsets = [4, 0], sizes = [1, 16], strides = [1, 1]} : vector<9x16xf32> to vector<1x16xf32>
    %114 = vector.shape_cast %113 : vector<1x16xf32> to vector<16xf32>
    %115 = vector.shape_cast %114 : vector<16xf32> to vector<1x1x16xf32>
    %116 = vector.broadcast %115 : vector<1x1x16xf32> to vector<8x8x16xf32>
    %117 = arith.mulf %112, %116 : vector<8x8x16xf32>
    %118 = arith.addf %111, %117 : vector<8x8x16xf32>
    %119 = vector.extract_strided_slice %82 {offsets = [3, 0, 0], sizes = [8, 8, 16], strides = [1, 1, 1]} : vector<14x8x16xf32> to vector<8x8x16xf32>
    %120 = vector.extract_strided_slice %79 {offsets = [5, 0], sizes = [1, 16], strides = [1, 1]} : vector<9x16xf32> to vector<1x16xf32>
    %121 = vector.shape_cast %120 : vector<1x16xf32> to vector<16xf32>
    %122 = vector.shape_cast %121 : vector<16xf32> to vector<1x1x16xf32>
    %123 = vector.broadcast %122 : vector<1x1x16xf32> to vector<8x8x16xf32>
    %124 = arith.mulf %119, %123 : vector<8x8x16xf32>
    %125 = arith.addf %118, %124 : vector<8x8x16xf32>
    %126 = vector.extract_strided_slice %80 {offsets = [6, 0, 0], sizes = [8, 8, 16], strides = [1, 1, 1]} : vector<14x8x16xf32> to vector<8x8x16xf32>
    %127 = vector.extract_strided_slice %79 {offsets = [6, 0], sizes = [1, 16], strides = [1, 1]} : vector<9x16xf32> to vector<1x16xf32>
    %128 = vector.shape_cast %127 : vector<1x16xf32> to vector<16xf32>
    %129 = vector.shape_cast %128 : vector<16xf32> to vector<1x1x16xf32>
    %130 = vector.broadcast %129 : vector<1x1x16xf32> to vector<8x8x16xf32>
    %131 = arith.mulf %126, %130 : vector<8x8x16xf32>
    %132 = arith.addf %125, %131 : vector<8x8x16xf32>
    %133 = vector.extract_strided_slice %81 {offsets = [6, 0, 0], sizes = [8, 8, 16], strides = [1, 1, 1]} : vector<14x8x16xf32> to vector<8x8x16xf32>
    %134 = vector.extract_strided_slice %79 {offsets = [7, 0], sizes = [1, 16], strides = [1, 1]} : vector<9x16xf32> to vector<1x16xf32>
    %135 = vector.shape_cast %134 : vector<1x16xf32> to vector<16xf32>
    %136 = vector.shape_cast %135 : vector<16xf32> to vector<1x1x16xf32>
    %137 = vector.broadcast %136 : vector<1x1x16xf32> to vector<8x8x16xf32>
    %138 = arith.mulf %133, %137 : vector<8x8x16xf32>
    %139 = arith.addf %132, %138 : vector<8x8x16xf32>
    %140 = vector.extract_strided_slice %82 {offsets = [6, 0, 0], sizes = [8, 8, 16], strides = [1, 1, 1]} : vector<14x8x16xf32> to vector<8x8x16xf32>
    %141 = vector.extract_strided_slice %79 {offsets = [8, 0], sizes = [1, 16], strides = [1, 1]} : vector<9x16xf32> to vector<1x16xf32>
    %142 = vector.shape_cast %141 : vector<1x16xf32> to vector<16xf32>
    %143 = vector.shape_cast %142 : vector<16xf32> to vector<1x1x16xf32>
    %144 = vector.broadcast %143 : vector<1x1x16xf32> to vector<8x8x16xf32>
    %145 = arith.mulf %140, %144 : vector<8x8x16xf32>
    %146 = arith.addf %139, %145 : vector<8x8x16xf32>
    %cst_13 = arith.constant 0.000000e+00 : f32
    %147 = vector.broadcast %cst_13 : f32 to vector<8x8x16xf32>
    %148 = arith.maximumf %146, %147 : vector<8x8x16xf32>
    %149 = tpu.concatenate %8, %78, %148 in 2 : vector<8x8x16xf32>, vector<8x8x16xf32>, vector<8x8x16xf32> -> vector<8x8x48xf32>
    %150 = vector.shape_cast %149 : vector<8x8x48xf32> to vector<64x48xf32>
    %151 = arith.truncf %150 : vector<64x48xf32> to vector<64x48xbf16>
    %c0_14 = arith.constant 0 : index
    %c0_15 = arith.constant 0 : index
    %152 = vector.load %arg5[%c0_14, %c0_15] : memref<48x8xbf16, #tpu.memory_space<vmem>>, vector<48x8xbf16>
    %cst_16 = arith.constant dense<0.000000e+00> : vector<64x8xf32>
    %153 = tpu.matmul %151, %152, %cst_16 {dimension_numbers = #tpu.dot_dimension_numbers<[1], [0], [0], [1], [0, 0, 1, 1], [], []>} : vector<64x48xbf16>, vector<48x8xbf16>, vector<64x8xf32> -> vector<64x8xf32>
    %cst_17 = arith.constant 0.000000e+00 : f32
    %154 = vector.broadcast %cst_17 : f32 to vector<64x8xf32>
    %155 = arith.maximumf %153, %154 : vector<64x8xf32>
    %156 = vector.shape_cast %155 : vector<64x8xf32> to vector<8x8x8xf32>
    %157 = arith.truncf %156 : vector<8x8x8xf32> to vector<8x8x8xbf16>
    %c0_18 = arith.constant 0 : index
    %c0_19 = arith.constant 0 : index
    %c0_20 = arith.constant 0 : index
    %c0_21 = arith.constant 0 : index
    %158 = vector.load %arg6[%c0_18, %c0_19, %c0_20, %c0_21] : memref<1x8x8x8xbf16, #tpu.memory_space<vmem>>, vector<1x8x8x8xbf16>
    %159 = vector.shape_cast %158 : vector<1x8x8x8xbf16> to vector<8x8x8xbf16>
    %160 = vector.shape_cast %157 : vector<8x8x8xbf16> to vector<1x8x8x8xbf16>
    tpu.vector_store %arg6[%c0_18, %c0_19, %c0_20, %c0_21], %160 {strides = array<i32>} : memref<1x8x8x8xbf16, #tpu.memory_space<vmem>>, vector<1x8x8x8xbf16>,
    return
  }
  func.func @transform_0(%arg0: i32) -> (i32, i32, i32, i32) {
    %c0_i32 = arith.constant 0 : i32
    %c0_i32_0 = arith.constant 0 : i32
    %c0_i32_1 = arith.constant 0 : i32
    %c0_i32_2 = arith.constant 0 : i32
    return %arg0, %c0_i32, %c0_i32_0, %c0_i32_1 : i32, i32, i32, i32
  }
  func.func @transform_1(%arg0: i32) -> (i32, i32) {
    %c0_i32 = arith.constant 0 : i32
    %c0_i32_0 = arith.constant 0 : i32
    %c0_i32_1 = arith.constant 0 : i32
    return %c0_i32, %c0_i32_0 : i32, i32
  }
  func.func @transform_2(%arg0: i32) -> (i32, i32) {
    %c0_i32 = arith.constant 0 : i32
    %c0_i32_0 = arith.constant 0 : i32
    %c0_i32_1 = arith.constant 0 : i32
    return %c0_i32, %c0_i32_0 : i32, i32
  }
  func.func @transform_3(%arg0: i32) -> (i32, i32) {
    %c0_i32 = arith.constant 0 : i32
    %c0_i32_0 = arith.constant 0 : i32
    %c0_i32_1 = arith.constant 0 : i32
    return %c0_i32, %c0_i32_0 : i32, i32
  }
  func.func @transform_4(%arg0: i32) -> (i32, i32) {
    %c0_i32 = arith.constant 0 : i32
    %c0_i32_0 = arith.constant 0 : i32
    %c0_i32_1 = arith.constant 0 : i32
    return %c0_i32, %c0_i32_0 : i32, i32
  }
  func.func @transform_5(%arg0: i32) -> (i32, i32, i32, i32) {
    %c0_i32 = arith.constant 0 : i32
    %c0_i32_0 = arith.constant 0 : i32
    %c0_i32_1 = arith.constant 0 : i32
    %c0_i32_2 = arith.constant 0 : i32
    return %arg0, %c0_i32, %c0_i32_0, %c0_i32_1 : i32, i32, i32, i32
  }
}

</mosaic_0001>

<llo_original>
// kernel: tpu_custom_call.1
$region0: #{tpu_custom_call.1}
  #allocation0 [shape = 'u32[]', space=smem, size = 0x4, offset = 0x4, fixed_abs, tag = 'smem constant byte address 0x4 - core index']
  #allocation1 [shape = 'u32[144,128]{1,0:T(1,128)}', space=vmem, size = 0x12000, scoped, tag = 'internal scratch']
  %s0 = inlined_call_operand.hbm [shape: bf16[6,14,16,64], index: 0, kind: input, shape index: {}]
  %s1 = inlined_call_operand.vmem [shape: bf16[64,48], index: 1, kind: input, shape index: {}]
  %s2 = inlined_call_operand.vmem [shape: f32[9,16], index: 2, kind: input, shape index: {}]
  %s3 = inlined_call_operand.vmem [shape: f32[9,16], index: 3, kind: input, shape index: {}]
  %s4 = inlined_call_operand.vmem [shape: bf16[48,8], index: 4, kind: input, shape index: {}]
  %s5 = inlined_call_operand.hbm [shape: bf16[6,8,8,8], index: 5, kind: output, shape index: {}]
  %s6 = sld [smem:[#allocation0]]
  $region57: #{tpu_custom_call.1} parent=0
    _
  %s8 = ssub.s32 1, %s6
  %s9 = scalar_select 0, %s8, %s6
  $region1: #{tpu_custom_call.1} parent=0
    #allocation2 [shape = 'u8[114688]{0}', space=vmem, size = 0x1c000, scoped, tag = 'input window, operand 0']
    #allocation3 [shape = 's32[2]{0}', space=sflag, size = 0x8, scoped, tag = 'scoped memory for tpu_custom_call.1']
    #allocation4 [shape = 's32[2]{0}', space=sflag, size = 0x8, scoped, tag = 'scoped memory for tpu_custom_call.1']
    #allocation5 [shape = 'u8[32768]{0}', space=vmem, size = 0x8000, scoped, tag = 'output window, operand 0']
    %10 = vsyncpa [#allocation3], 0
    %s11 = scalar_lea.sflag [#allocation3], 1
    %12 = vsyncpa %s11, 0
    %13 = vsyncpa [#allocation4], 0
    %s14 = scalar_lea.sflag [#allocation4], 1
    %15 = vsyncpa %s14, 0
    loop: start=0, step=1, limit=8
    $region2: #{tpu_custom_call.1} parent=1 // loop_pre_header
      _
    $region3: #{tpu_custom_call.1} parent=1 // loop_header
      %s17 = sphi 0, %s21
      %p18 = scmp.ge.s32.totalorder %s17, 8
      %s27 = sphi 0, %s29
      %s30 = sphi 0, %s27
      %s31 = sphi 0, %s30
      %s47 = sphi 0, %s31
      %s51 = sphi 0, %s51
      %s53 = sphi 0, %s51
      %s54 = sphi 0, %s53
      %s68 = sphi 0, %s54
      %s72 = sphi 0, %s72
      %s74 = sphi 0, %s72
      %s75 = sphi 0, %s74
      %s89 = sphi 0, %s75
      %s93 = sphi 0, %s93
      %s95 = sphi 0, %s93
      %s96 = sphi 0, %s95
      %s110 = sphi 0, %s96
      %s114 = sphi 0, %s114
      %s116 = sphi 0, %s114
      %s117 = sphi 0, %s116
      %s131 = sphi 0, %s117
      %s137 = sphi 0, %s139
      %s140 = sphi 0, %s137
      %s141 = sphi 0, %s140
      %s157 = sphi 0, %s141
    $region4: #{tpu_custom_call.1} parent=1 // loop_header_branch
      %20 = sbr.rel (%p18) target = $region8
    $region5: #{tpu_custom_call.1} parent=1 // loop_body
      %s22 = ssub.s32 %s17, 1
      %s23 = ssub.s32 %s17, 2
      %s24 = sadd.s32 %s17, 1
      %s25 = ssub.s32 %s17, %s24
      %p26 = scmp.eq.s32.totalorder %s25, 0
      %s28 = sadd.s32 %s27, 1
      %s29 = scalar_select %p26, %s27, %s28
      %p32 = pneg %p26
      %p33 = scmp.eq.s32.totalorder %s17, 5
      %p34 = por %p32, %p33
      %p35 = scmp.ne.s32.totalorder %s27, %s30
      %p36 = scmp.eq.s32.totalorder %s17, 0
      %p37 = por %p35, %p36
      %p38 = scmp.ne.s32.totalorder %s27, %s30
      %p39 = scmp.eq.s32.totalorder %s22, 5
      %p40 = por %p38, %p39
      %p41 = scmp.ne.s32.totalorder %s30, %s31
      %p42 = scmp.eq.s32.totalorder %s22, 0
      %p43 = por %p41, %p42
      %p44 = scmp.ne.s32.totalorder %s30, %s31
      %p45 = scmp.eq.s32.totalorder %s23, 5
      %p46 = por %p44, %p45
      %p48 = scmp.ne.s32.totalorder %s31, %s47
      %p49 = scmp.eq.s32.totalorder %s23, 0
      %p50 = por %p48, %p49
      %s52 = sadd.s32 %s51, 1
      %p55 = scmp.eq.s32.totalorder %s17, 5
      %p56 = scmp.ne.s32.totalorder %s51, %s53
      %p57 = scmp.eq.s32.totalorder %s17, 0
      %p58 = por %p56, %p57
      %p59 = scmp.ne.s32.totalorder %s51, %s53
      %p60 = scmp.eq.s32.totalorder %s22, 5
      %p61 = por %p59, %p60
      %p62 = scmp.ne.s32.totalorder %s53, %s54
      %p63 = scmp.eq.s32.totalorder %s22, 0
      %p64 = por %p62, %p63
      %p65 = scmp.ne.s32.totalorder %s53, %s54
      %p66 = scmp.eq.s32.totalorder %s23, 5
      %p67 = por %p65, %p66
      %p69 = scmp.ne.s32.totalorder %s54, %s68
      %p70 = scmp.eq.s32.totalorder %s23, 0
      %p71 = por %p69, %p70
      %s73 = sadd.s32 %s72, 1
      %p76 = scmp.eq.s32.totalorder %s17, 5
      %p77 = scmp.ne.s32.totalorder %s72, %s74
      %p78 = scmp.eq.s32.totalorder %s17, 0
      %p79 = por %p77, %p78
      %p80 = scmp.ne.s32.totalorder %s72, %s74
      %p81 = scmp.eq.s32.totalorder %s22, 5
      %p82 = por %p80, %p81
      %p83 = scmp.ne.s32.totalorder %s74, %s75
      %p84 = scmp.eq.s32.totalorder %s22, 0
      %p85 = por %p83, %p84
      %p86 = scmp.ne.s32.totalorder %s74, %s75
      %p87 = scmp.eq.s32.totalorder %s23, 5
      %p88 = por %p86, %p87
      %p90 = scmp.ne.s32.totalorder %s75, %s89
      %p91 = scmp.eq.s32.totalorder %s23, 0
      %p92 = por %p90, %p91
      %s94 = sadd.s32 %s93, 1
      %p97 = scmp.eq.s32.totalorder %s17, 5
      %p98 = scmp.ne.s32.totalorder %s93, %s95
      %p99 = scmp.eq.s32.totalorder %s17, 0
      %p100 = por %p98, %p99
      %p101 = scmp.ne.s32.totalorder %s93, %s95
      %p102 = scmp.eq.s32.totalorder %s22, 5
      %p103 = por %p101, %p102
      %p104 = scmp.ne.s32.totalorder %s95, %s96
      %p105 = scmp.eq.s32.totalorder %s22, 0
      %p106 = por %p104, %p105
      %p107 = scmp.ne.s32.totalorder %s95, %s96
      %p108 = scmp.eq.s32.totalorder %s23, 5
      %p109 = por %p107, %p108
      %p111 = scmp.ne.s32.totalorder %s96, %s110
      %p112 = scmp.eq.s32.totalorder %s23, 0
      %p113 = por %p111, %p112
      %s115 = sadd.s32 %s114, 1
      %p118 = scmp.eq.s32.totalorder %s17, 5
      %p119 = scmp.ne.s32.totalorder %s114, %s116
      %p120 = scmp.eq.s32.totalorder %s17, 0
      %p121 = por %p119, %p120
      %p122 = scmp.ne.s32.totalorder %s114, %s116
      %p123 = scmp.eq.s32.totalorder %s22, 5
      %p124 = por %p122, %p123
      %p125 = scmp.ne.s32.totalorder %s116, %s117
      %p126 = scmp.eq.s32.totalorder %s22, 0
      %p127 = por %p125, %p126
      %p128 = scmp.ne.s32.totalorder %s116, %s117
      %p129 = scmp.eq.s32.totalorder %s23, 5
      %p130 = por %p128, %p129
      %p132 = scmp.ne.s32.totalorder %s117, %s131
      %p133 = scmp.eq.s32.totalorder %s23, 0
      %p134 = por %p132, %p133
      %s135 = ssub.s32 %s17, %s24
      %p136 = scmp.eq.s32.totalorder %s135, 0
      %s138 = sadd.s32 %s137, 1
      %s139 = scalar_select %p136, %s137, %s138
      %p142 = pneg %p136
      %p143 = scmp.eq.s32.totalorder %s17, 5
      %p144 = por %p142, %p143
      %p145 = scmp.ne.s32.totalorder %s137, %s140
      %p146 = scmp.eq.s32.totalorder %s17, 0
      %p147 = por %p145, %p146
      %p148 = scmp.ne.s32.totalorder %s137, %s140
      %p149 = scmp.eq.s32.totalorder %s22, 5
      %p150 = por %p148, %p149
      %p151 = scmp.ne.s32.totalorder %s140, %s141
      %p152 = scmp.eq.s32.totalorder %s22, 0
      %p153 = por %p151, %p152
      %p154 = scmp.ne.s32.totalorder %s140, %s141
      %p155 = scmp.eq.s32.totalorder %s23, 5
      %p156 = por %p154, %p155
      %p158 = scmp.ne.s32.totalorder %s141, %s157
      %p159 = scmp.eq.s32.totalorder %s23, 0
      %p160 = por %p158, %p159
      %p161 = scmp.le.s32.totalorder 1, %s17
      %p162 = scmp.lt.s32.totalorder %s17, 7
      %p163 = pnand %p161, %p162
      %p164 = pneg %p163
      // Predicated region
      $region9: #{tpu_custom_call.1} parent=5 // pred_check
        _
      $region10: #{tpu_custom_call.1} parent=5 // pred_check_branch
        %166 = sbr.rel (%p163) target = $region12
      $region11: #{tpu_custom_call.1} parent=5 // pred_region
        %s167 = ssub.s32 %s17, 1
        // Predicated region
        $region13: #{tpu_custom_call.1} parent=11 // pred_check
          %p168 = pneg %p64
        $region14: #{tpu_custom_call.1} parent=11 // pred_check_branch
          %170 = sbr.rel (%p168) target = $region16
        $region15: #{tpu_custom_call.1} parent=11 // pred_region
          _
        $region16: #{tpu_custom_call.1} parent=11 // pred_fallthru
          _
        // Predicated region
        $region17: #{tpu_custom_call.1} parent=11 // pred_check
          %p171 = pneg %p85
        $region18: #{tpu_custom_call.1} parent=11 // pred_check_branch
          %173 = sbr.rel (%p171) target = $region20
        $region19: #{tpu_custom_call.1} parent=11 // pred_region
          _
        $region20: #{tpu_custom_call.1} parent=11 // pred_fallthru
          _
        // Predicated region
        $region21: #{tpu_custom_call.1} parent=11 // pred_check
          %p174 = pneg %p106
        $region22: #{tpu_custom_call.1} parent=11 // pred_check_branch
          %176 = sbr.rel (%p174) target = $region24
        $region23: #{tpu_custom_call.1} parent=11 // pred_region
          _
        $region24: #{tpu_custom_call.1} parent=11 // pred_fallthru
          _
        // Predicated region
        $region25: #{tpu_custom_call.1} parent=11 // pred_check
          %p177 = pneg %p127
        $region26: #{tpu_custom_call.1} parent=11 // pred_check_branch
          %179 = sbr.rel (%p177) target = $region28
        $region27: #{tpu_custom_call.1} parent=11 // pred_region
          _
        $region28: #{tpu_custom_call.1} parent=11 // pred_fallthru
          _
      $region12: #{tpu_custom_call.1} parent=5 // pred_fallthru
        _
      %p180 = scmp.lt.s32.totalorder %s17, 6
      // Predicated region
      $region29: #{tpu_custom_call.1} parent=5 // pred_check
        %p181 = pneg %p180
      $region30: #{tpu_custom_call.1} parent=5 // pred_check_branch
        %183 = sbr.rel (%p181) target = $region32
      $region31: #{tpu_custom_call.1} parent=5 // pred_region
        // Predicated region
        $region33: #{tpu_custom_call.1} parent=31 // pred_check
          %p184 = pneg %p37
        $region34: #{tpu_custom_call.1} parent=31 // pred_check_branch
          %186 = sbr.rel (%p184) target = $region36
        $region35: #{tpu_custom_call.1} parent=31 // pred_region
          %s187 = sand.u32 %s27, 1
          %s188 = scalar_lea.sflag [#allocation3], %s187
          %s189 = sand.u32 %s27, 1
          %s190 = smul.addr %s189, 112
          %s191 = scalar_lea.vmem [#allocation2], %s190
          %s193 = ssub.s32 1792, 1792
          %194 = vsyncadd %s188, %s193
          %s195 = smul.addr %s17, 28
          %s196 = smul.addr %s195, 64
          %s197 = scalar_lea.hbm %s0, %s196
          %s198 = sshll.u32 %s191, 4
          %s199 = int_to_ptr.vmem [resolvable:$true] %s198
          %204 = dma.hbm_to_vmem [thread:$0]  %s197, 1792, %s199, %s188, 64, 64, 4
        $region36: #{tpu_custom_call.1} parent=31 // pred_fallthru
          _
      $region32: #{tpu_custom_call.1} parent=5 // pred_fallthru
        _
      %p205 = scmp.le.s32.totalorder 1, %s17
      %p206 = scmp.lt.s32.totalorder %s17, 7
      %p207 = pnand %p205, %p206
      %p208 = pneg %p207
      // Predicated region
      $region37: #{tpu_custom_call.1} parent=5 // pred_check
        _
      $region38: #{tpu_custom_call.1} parent=5 // pred_check_branch
        %210 = sbr.rel (%p207) target = $region40
      $region39: #{tpu_custom_call.1} parent=5 // pred_region
        %s211 = ssub.s32 %s17, 1
        %s212 = sand.u32 %s30, 1
        %s213 = scalar_lea.sflag [#allocation3], %s212
        %s214 = sand.u32 %s30, 1
        %s215 = smul.addr %s214, 112
        %s216 = scalar_lea.vmem [#allocation2], %s215
        // Predicated region
        $region41: #{tpu_custom_call.1} parent=39 // pred_check
          %p217 = pneg %p43
        $region42: #{tpu_custom_call.1} parent=39 // pred_check_branch
          %219 = sbr.rel (%p217) target = $region44
        $region43: #{tpu_custom_call.1} parent=39 // pred_region
          %220 = dma.done %s213, 1792
        $region44: #{tpu_custom_call.1} parent=39 // pred_fallthru
          _
        %s221 = sand.u32 %s30, 1
        %s222 = scalar_lea.sflag [#allocation3], %s221
        %s223 = sand.u32 %s30, 1
        %s224 = smul.addr %s223, 112
        %s225 = scalar_lea.vmem [#allocation2], %s224
        %p226 = pneg %p43
        %p227 = pneg %p40
        %p228 = pneg %p64
        %p229 = pneg %p61
        %p230 = pneg %p85
        %p231 = pneg %p82
        %p232 = pneg %p106
        %p233 = pneg %p103
        %p234 = pneg %p127
        %p235 = pneg %p124
        %p236 = pneg %p153
        %p237 = pneg %p150
        %s238 = sand.u32 %s140, 1
        %s239 = scalar_lea.sflag [#allocation4], %s238
        %s240 = sand.u32 %s140, 1
        %s241 = smul.addr %s240, 32
        %s242 = scalar_lea.vmem [#allocation5], %s241
        %v244 = vld [vmem:[%s216] sm:$0xf]
        %v245 = vld [vmem:[%s216 + $0x4] sm:$0xf]
        %v246 = vld [vmem:[%s216 + $0x8] sm:$0xf]
        %v247 = vld [vmem:[%s216 + $0xc] sm:$0xf]
        %v248 = vld [vmem:[%s216 + $0x10] sm:$0xf]
        %v249 = vld [vmem:[%s216 + $0x14] sm:$0xf]
        %v250 = vld [vmem:[%s216 + $0x18] sm:$0xf]
        %v251 = vld [vmem:[%s216 + $0x1c] sm:$0xf]
        %v252 = vld [vmem:[%s216 + $0x20] sm:$0xf]
        %v253 = vld [vmem:[%s216 + $0x24] sm:$0xf]
        %v254 = vld [vmem:[%s216 + $0x28] sm:$0xf]
        %v255 = vld [vmem:[%s216 + $0x2c] sm:$0xf]
        %v256 = vld [vmem:[%s216 + $0x30] sm:$0xf]
        %v257 = vld [vmem:[%s216 + $0x34] sm:$0xf]
        %v258 = vld [vmem:[%s216 + $0x38] sm:$0xf]
        %v259 = vld [vmem:[%s216 + $0x3c] sm:$0xf]
        %v260 = vld [vmem:[%s216 + $0x40] sm:$0xf]
        %v261 = vld [vmem:[%s216 + $0x44] sm:$0xf]
        %v262 = vld [vmem:[%s216 + $0x48] sm:$0xf]
        %v263 = vld [vmem:[%s216 + $0x4c] sm:$0xf]
        %v264 = vld [vmem:[%s216 + $0x50] sm:$0xf]
        %v265 = vld [vmem:[%s216 + $0x54] sm:$0xf]
        %v266 = vld [vmem:[%s216 + $0x58] sm:$0xf]
        %v267 = vld [vmem:[%s216 + $0x5c] sm:$0xf]
        %v268 = vld [vmem:[%s216 + $0x60] sm:$0xf]
        %v269 = vld [vmem:[%s216 + $0x64] sm:$0xf]
        %v270 = vld [vmem:[%s216 + $0x68] sm:$0xf]
        %v271 = vld [vmem:[%s216 + $0x6c] sm:$0xf]
        %v272 = vld [vmem:[%s1] sm:$0xf]
        %v273 = vld [vmem:[%s1 + $0x4] sm:$0xf]
        %v274 = vld [vmem:[%s1 + $0x8] sm:$0xf]
        %v275 = vld [vmem:[%s1 + $0xc] sm:$0xf]
        %v276 = vld [vmem:[%s1 + $0x10] sm:$0xf]
        %v277 = vld [vmem:[%s1 + $0x14] sm:$0xf]
        %v278 = vld [vmem:[%s1 + $0x18] sm:$0xf]
        %v279 = vld [vmem:[%s1 + $0x1c] sm:$0xf]
        %v308 = vunpack.c.l.b16 %v244
        %v309 = vunpack.c.l.b16 %v245
        %v310 = vunpack.c.l.b16 %v246
        %v311 = vunpack.c.l.b16 %v247
        %v312 = vunpack.c.l.b16 %v248
        %v313 = vunpack.c.l.b16 %v249
        %v314 = vunpack.c.l.b16 %v250
        %v315 = vunpack.c.l.b16 %v251
        %v316 = vunpack.c.l.b16 %v252
        %v317 = vunpack.c.l.b16 %v253
        %v318 = vunpack.c.l.b16 %v254
        %v319 = vunpack.c.l.b16 %v255
        %v320 = vunpack.c.l.b16 %v256
        %v321 = vunpack.c.l.b16 %v257
        %v322 = vunpack.c.l.b16 %v258
        %v323 = vunpack.c.l.b16 %v259
        %v324 = vunpack.c.l.b16 %v260
        %v325 = vunpack.c.l.b16 %v261
        %v326 = vunpack.c.l.b16 %v262
        %v327 = vunpack.c.l.b16 %v263
        %v328 = vunpack.c.l.b16 %v264
        %v329 = vunpack.c.l.b16 %v265
        %v330 = vunpack.c.l.b16 %v266
        %v331 = vunpack.c.l.b16 %v267
        %v332 = vunpack.c.l.b16 %v268
        %v333 = vunpack.c.l.b16 %v269
        %v334 = vunpack.c.l.b16 %v270
        %v335 = vunpack.c.l.b16 %v271
        %v336 = vpack.c.b16 %v309, %v308
        %v337 = vpack.c.b16 %v311, %v310
        %v338 = vpack.c.b16 %v313, %v312
        %v339 = vpack.c.b16 %v315, %v314
        %v340 = vpack.c.b16 %v317, %v316
        %v341 = vpack.c.b16 %v319, %v318
        %v342 = vpack.c.b16 %v321, %v320
        %v343 = vpack.c.b16 %v323, %v322
        %v344 = vpack.c.b16 %v325, %v324
        %v345 = vpack.c.b16 %v327, %v326
        %v346 = vpack.c.b16 %v329, %v328
        %v347 = vpack.c.b16 %v331, %v330
        %v348 = vpack.c.b16 %v333, %v332
        %v349 = vpack.c.b16 %v335, %v334
        %v358 = vunpack.c.l.b16 %v272
        %v359 = vunpack.c.l.b16 %v273
        %v360 = vunpack.c.l.b16 %v274
        %v361 = vunpack.c.l.b16 %v275
        %v362 = vunpack.c.l.b16 %v276
        %v363 = vunpack.c.l.b16 %v277
        %v364 = vunpack.c.l.b16 %v278
        %v365 = vunpack.c.l.b16 %v279
        %v366 = vpack.c.b16 %v359, %v358
        %v367 = vpack.c.b16 %v361, %v360
        %v368 = vpack.c.b16 %v363, %v362
        %v369 = vpack.c.b16 %v365, %v364
        %vm374 = vcmask 523264
        %v376 = vsel %vm374, %v336, 0
        %v379 = vsel %vm374, %v337, 0
        %v382 = vsel %vm374, %v338, 0
        %v385 = vsel %vm374, %v339, 0
        %v388 = vsel %vm374, %v340, 0
        %v391 = vsel %vm374, %v341, 0
        %v394 = vsel %vm374, %v342, 0
        %v397 = vsel %vm374, %v343, 0
        %v400 = vsel %vm374, %v344, 0
        %v403 = vsel %vm374, %v345, 0
        %v406 = vsel %vm374, %v346, 0
        %v409 = vsel %vm374, %v347, 0
        %v412 = vsel %vm374, %v348, 0
        %v415 = vsel %vm374, %v349, 0
        %417 = vmatprep.subr.bf16.mxu0 0
        %418 = vmatpush1.bf16.msra.mxu0 %v366
        %419 = vmatprep.subr.bf16.mxu0 0
        %420 = vmatpush1.bf16.msra.mxu0 %v367
        %421 = vmatprep.subr.bf16.mxu0 0
        %422 = vmatpush1.bf16.msra.mxu0 %v368
        %423 = vmatprep.subr.bf16.mxu0 0
        %424 = vmatpush1.bf16.msra.mxu0 %v369
        %425 = vmatprep.subr.bf16.mxu0 0
        %426 = vmatpush1.bf16.msra.mxu0 0
        %427 = vmatprep.subr.bf16.mxu0 0
        %428 = vmatpush1.bf16.msra.mxu0 0
        %429 = vmatprep.subr.bf16.mxu0 0
        %430 = vmatpush1.bf16.msra.mxu0 0
        %431 = vmatprep.subr.bf16.mxu0 0
        %432 = vmatpush1.bf16.msra.mxu0 0
        %433 = vmatprep.subr.bf16.mxu0 0
        %434 = vmatpush1.bf16.msra.mxu0 0
        %435 = vmatprep.subr.bf16.mxu0 0
        %436 = vmatpush1.bf16.msra.mxu0 0
        %437 = vmatprep.subr.bf16.mxu0 0
        %438 = vmatpush1.bf16.msra.mxu0 0
        %439 = vmatprep.subr.bf16.mxu0 0
        %440 = vmatpush1.bf16.msra.mxu0 0
        %441 = vmatprep.subr.bf16.mxu0 0
        %442 = vmatpush1.bf16.msra.mxu0 0
        %443 = vmatprep.subr.bf16.mxu0 0
        %444 = vmatpush1.bf16.msra.mxu0 0
        %445 = vmatprep.subr.bf16.mxu0 0
        %446 = vmatpush1.bf16.msra.mxu0 0
        %447 = vmatprep.subr.bf16.mxu0 0
        %448 = vmatpush1.bf16.msra.mxu0 0
        %449 = vmatprep.mubr.bf16.mxu0 0
        %450 = vmatmul.mubr.bf16.gmra.mrb[0].mxu0 %v376
        %v451 = vpop.f32.mrb[0].mxu0
        %v452 = vadd.f32 0.0, %v451
        %v453 = vpop.f32.mrb[0].mxu0
        %v454 = vpop.f32.mrb[0].mxu0
        %v455 = vadd.f32 0.0, %v454
        %v456 = vpop.f32.mrb[0].mxu0
        %457 = vmatprep.mubr.bf16.mxu0 0
        %458 = vmatmul.mubr.bf16.gmra.mrb[0].mxu0 %v379
        %v459 = vpop.f32.mrb[0].mxu0
        %v460 = vadd.f32 0.0, %v459
        %v461 = vpop.f32.mrb[0].mxu0
        %v462 = vpop.f32.mrb[0].mxu0
        %v463 = vadd.f32 0.0, %v462
        %v464 = vpop.f32.mrb[0].mxu0
        %465 = vmatprep.mubr.bf16.mxu0 0
        %466 = vmatmul.mubr.bf16.gmra.mrb[0].mxu0 %v382
        %v467 = vpop.f32.mrb[0].mxu0
        %v468 = vadd.f32 0.0, %v467
        %v469 = vpop.f32.mrb[0].mxu0
        %v470 = vpop.f32.mrb[0].mxu0
        %v471 = vadd.f32 0.0, %v470
        %v472 = vpop.f32.mrb[0].mxu0
        %473 = vmatprep.mubr.bf16.mxu0 0
        %474 = vmatmul.mubr.bf16.gmra.mrb[0].mxu0 %v385
        %v475 = vpop.f32.mrb[0].mxu0
        %v476 = vadd.f32 0.0, %v475
        %v477 = vpop.f32.mrb[0].mxu0
        %v478 = vpop.f32.mrb[0].mxu0
        %v479 = vadd.f32 0.0, %v478
        %v480 = vpop.f32.mrb[0].mxu0
        %481 = vmatprep.mubr.bf16.mxu0 0
        %482 = vmatmul.mubr.bf16.gmra.mrb[0].mxu0 %v388
        %v483 = vpop.f32.mrb[0].mxu0
        %v484 = vadd.f32 0.0, %v483
        %v485 = vpop.f32.mrb[0].mxu0
        %v486 = vpop.f32.mrb[0].mxu0
        %v487 = vadd.f32 0.0, %v486
        %v488 = vpop.f32.mrb[0].mxu0
        %489 = vmatprep.mubr.bf16.mxu0 0
        %490 = vmatmul.mubr.bf16.gmra.mrb[0].mxu0 %v391
        %v491 = vpop.f32.mrb[0].mxu0
        %v492 = vadd.f32 0.0, %v491
        %v493 = vpop.f32.mrb[0].mxu0
        %v494 = vpop.f32.mrb[0].mxu0
        %v495 = vadd.f32 0.0, %v494
        %v496 = vpop.f32.mrb[0].mxu0
        %497 = vmatprep.mubr.bf16.mxu0 0
        %498 = vmatmul.mubr.bf16.gmra.mrb[0].mxu0 %v394
        %v499 = vpop.f32.mrb[0].mxu0
        %v500 = vadd.f32 0.0, %v499
        %v501 = vpop.f32.mrb[0].mxu0
        %v502 = vpop.f32.mrb[0].mxu0
        %v503 = vadd.f32 0.0, %v502
        %v504 = vpop.f32.mrb[0].mxu0
        %505 = vmatprep.mubr.bf16.mxu0 0
        %506 = vmatmul.mubr.bf16.gmra.mrb[0].mxu0 %v397
        %v507 = vpop.f32.mrb[0].mxu0
        %v508 = vadd.f32 0.0, %v507
        %v509 = vpop.f32.mrb[0].mxu0
        %v510 = vpop.f32.mrb[0].mxu0
        %v511 = vadd.f32 0.0, %v510
        %v512 = vpop.f32.mrb[0].mxu0
        %513 = vmatprep.mubr.bf16.mxu0 0
        %514 = vmatmul.mubr.bf16.gmra.mrb[0].mxu0 %v400
        %v515 = vpop.f32.mrb[0].mxu0
        %v516 = vadd.f32 0.0, %v515
        %v517 = vpop.f32.mrb[0].mxu0
        %v518 = vpop.f32.mrb[0].mxu0
        %v519 = vadd.f32 0.0, %v518
        %v520 = vpop.f32.mrb[0].mxu0
        %521 = vmatprep.mubr.bf16.mxu0 0
        %522 = vmatmul.mubr.bf16.gmra.mrb[0].mxu0 %v403
        %v523 = vpop.f32.mrb[0].mxu0
        %v524 = vadd.f32 0.0, %v523
        %v525 = vpop.f32.mrb[0].mxu0
        %v526 = vpop.f32.mrb[0].mxu0
        %v527 = vadd.f32 0.0, %v526
        %v528 = vpop.f32.mrb[0].mxu0
        %529 = vmatprep.mubr.bf16.mxu0 0
        %530 = vmatmul.mubr.bf16.gmra.mrb[0].mxu0 %v406
        %v531 = vpop.f32.mrb[0].mxu0
        %v532 = vadd.f32 0.0, %v531
        %v533 = vpop.f32.mrb[0].mxu0
        %v534 = vpop.f32.mrb[0].mxu0
        %v535 = vadd.f32 0.0, %v534
        %v536 = vpop.f32.mrb[0].mxu0
        %537 = vmatprep.mubr.bf16.mxu0 0
        %538 = vmatmul.mubr.bf16.gmra.mrb[0].mxu0 %v409
        %v539 = vpop.f32.mrb[0].mxu0
        %v540 = vadd.f32 0.0, %v539
        %v541 = vpop.f32.mrb[0].mxu0
        %v542 = vpop.f32.mrb[0].mxu0
        %v543 = vadd.f32 0.0, %v542
        %v544 = vpop.f32.mrb[0].mxu0
        %545 = vmatprep.mubr.bf16.mxu0 0
        %546 = vmatmul.mubr.bf16.gmra.mrb[0].mxu0 %v412
        %v547 = vpop.f32.mrb[0].mxu0
        %v548 = vadd.f32 0.0, %v547
        %v549 = vpop.f32.mrb[0].mxu0
        %v550 = vpop.f32.mrb[0].mxu0
        %v551 = vadd.f32 0.0, %v550
        %v552 = vpop.f32.mrb[0].mxu0
        %553 = vmatprep.mubr.bf16.mxu0 0
        %554 = vmatmul.mubr.bf16.gmra.mrb[0].mxu0 %v415
        %v555 = vpop.f32.mrb[0].mxu0
        %v556 = vadd.f32 0.0, %v555
        %v557 = vpop.f32.mrb[0].mxu0
        %v558 = vpop.f32.mrb[0].mxu0
        %v559 = vadd.f32 0.0, %v558
        %v560 = vpop.f32.mrb[0].mxu0
        %561 = vdwg.mxu0
        %v562 = vmax.f32 %v452, 0.0
        %v563 = vmax.f32 %v455, 0.0
        %v564 = vmax.f32 %v460, 0.0
        %v565 = vmax.f32 %v463, 0.0
        %v566 = vmax.f32 %v468, 0.0
        %v567 = vmax.f32 %v471, 0.0
        %v568 = vmax.f32 %v476, 0.0
        %v569 = vmax.f32 %v479, 0.0
        %v570 = vmax.f32 %v484, 0.0
        %v571 = vmax.f32 %v487, 0.0
        %v572 = vmax.f32 %v492, 0.0
        %v573 = vmax.f32 %v495, 0.0
        %v574 = vmax.f32 %v500, 0.0
        %v575 = vmax.f32 %v503, 0.0
        %v576 = vmax.f32 %v508, 0.0
        %v577 = vmax.f32 %v511, 0.0
        %v578 = vmax.f32 %v516, 0.0
        %v579 = vmax.f32 %v519, 0.0
        %v580 = vmax.f32 %v524, 0.0
        %v581 = vmax.f32 %v527, 0.0
        %v582 = vmax.f32 %v532, 0.0
        %v583 = vmax.f32 %v535, 0.0
        %v584 = vmax.f32 %v540, 0.0
        %v585 = vmax.f32 %v543, 0.0
        %v586 = vmax.f32 %v548, 0.0
        %v587 = vmax.f32 %v551, 0.0
        %v588 = vmax.f32 %v556, 0.0
        %v589 = vmax.f32 %v559, 0.0
        %v590 = vld [vmem:[%s2] sm:$0xff]
        %v591 = vld [vmem:[%s2 + $0x8] sm:$0x1]
        %v592 = vlaneseq
        %v593 = vshrl.u32 %v592, 7
        %v594 = vsub.s32 0, %v593
        %v595 = vrot.slane %v590, %v594
        %597 = vrot.lane.b32.xlu0 %v595, 16
        %v598 = vpop.permute.xlu0 %597
        %v600 = vmul.f32 %v566, %v598
        %v601 = vmul.f32 %v567, %v598
        %v602 = vmul.f32 %v568, %v598
        %v603 = vmul.f32 %v569, %v598
        %v604 = vmul.f32 %v570, %v598
        %v605 = vmul.f32 %v571, %v598
        %v606 = vmul.f32 %v572, %v598
        %v607 = vmul.f32 %v573, %v598
        %v608 = vmul.f32 %v574, %v598
        %v609 = vmul.f32 %v575, %v598
        %v610 = vmul.f32 %v576, %v598
        %v611 = vmul.f32 %v577, %v598
        %v612 = vmul.f32 %v578, %v598
        %v613 = vmul.f32 %v579, %v598
        %v614 = vmul.f32 %v580, %v598
        %v615 = vmul.f32 %v581, %v598
        %v616 = vadd.f32 %v600, 0.0
        %v617 = vadd.f32 %v601, 0.0
        %v618 = vadd.f32 %v602, 0.0
        %v619 = vadd.f32 %v603, 0.0
        %v620 = vadd.f32 %v604, 0.0
        %v621 = vadd.f32 %v605, 0.0
        %v622 = vadd.f32 %v606, 0.0
        %v623 = vadd.f32 %v607, 0.0
        %v624 = vadd.f32 %v608, 0.0
        %v625 = vadd.f32 %v609, 0.0
        %v626 = vadd.f32 %v610, 0.0
        %v627 = vadd.f32 %v611, 0.0
        %v628 = vadd.f32 %v612, 0.0
        %v629 = vadd.f32 %v613, 0.0
        %v630 = vadd.f32 %v614, 0.0
        %v631 = vadd.f32 %v615, 0.0
        %v632 = vlaneseq
        %v633 = vshrl.u32 %v632, 7
        %v634 = vsub.s32 1, %v633
        %v635 = vrot.slane %v590, %v634
        %637 = vrot.lane.b32.xlu0 %v635, 16
        %v638 = vpop.permute.xlu0 %637
        %v640 = vmul.f32 %v566, %v638
        %v641 = vmul.f32 %v567, %v638
        %v642 = vmul.f32 %v568, %v638
        %v643 = vmul.f32 %v569, %v638
        %v644 = vmul.f32 %v570, %v638
        %v645 = vmul.f32 %v571, %v638
        %v646 = vmul.f32 %v572, %v638
        %v647 = vmul.f32 %v573, %v638
        %v648 = vmul.f32 %v574, %v638
        %v649 = vmul.f32 %v575, %v638
        %v650 = vmul.f32 %v576, %v638
        %v651 = vmul.f32 %v577, %v638
        %v652 = vmul.f32 %v578, %v638
        %v653 = vmul.f32 %v579, %v638
        %v654 = vmul.f32 %v580, %v638
        %v655 = vmul.f32 %v581, %v638
        %vm672 = vcmask 1046528
        %v673 = vrot.slane %v640, 1
        %v674 = vrot.slane %v641, 1
        %v675 = vsel %vm672, %v673, %v674
        %v676 = vrot.slane %v642, 1
        %v677 = vrot.slane %v643, 1
        %v678 = vsel %vm672, %v676, %v677
        %v679 = vrot.slane %v644, 1
        %v680 = vrot.slane %v645, 1
        %v681 = vsel %vm672, %v679, %v680
        %v682 = vrot.slane %v646, 1
        %v683 = vrot.slane %v647, 1
        %v684 = vsel %vm672, %v682, %v683
        %v685 = vrot.slane %v648, 1
        %v686 = vrot.slane %v649, 1
        %v687 = vsel %vm672, %v685, %v686
        %v688 = vrot.slane %v650, 1
        %v689 = vrot.slane %v651, 1
        %v690 = vsel %vm672, %v688, %v689
        %v691 = vrot.slane %v652, 1
        %v692 = vrot.slane %v653, 1
        %v693 = vsel %vm672, %v691, %v692
        %v694 = vrot.slane %v654, 1
        %v695 = vrot.slane %v655, 1
        %v696 = vsel %vm672, %v694, %v695
        %v713 = vadd.f32 %v616, %v675
        %v714 = vadd.f32 %v617, %v674
        %v715 = vadd.f32 %v618, %v678
        %v716 = vadd.f32 %v619, %v677
        %v717 = vadd.f32 %v620, %v681
        %v718 = vadd.f32 %v621, %v680
        %v719 = vadd.f32 %v622, %v684
        %v720 = vadd.f32 %v623, %v683
        %v721 = vadd.f32 %v624, %v687
        %v722 = vadd.f32 %v625, %v686
        %v723 = vadd.f32 %v626, %v690
        %v724 = vadd.f32 %v627, %v689
        %v725 = vadd.f32 %v628, %v693
        %v726 = vadd.f32 %v629, %v692
        %v727 = vadd.f32 %v630, %v696
        %v728 = vadd.f32 %v631, %v695
        %v729 = vlaneseq
        %v730 = vshrl.u32 %v729, 7
        %v731 = vsub.s32 2, %v730
        %v732 = vrot.slane %v590, %v731
        %734 = vrot.lane.b32.xlu0 %v732, 16
        %v735 = vpop.permute.xlu0 %734
        %v737 = vmul.f32 %v566, %v735
        %v738 = vmul.f32 %v567, %v735
        %v739 = vmul.f32 %v568, %v735
        %v740 = vmul.f32 %v569, %v735
        %v741 = vmul.f32 %v570, %v735
        %v742 = vmul.f32 %v571, %v735
        %v743 = vmul.f32 %v572, %v735
        %v744 = vmul.f32 %v573, %v735
        %v745 = vmul.f32 %v574, %v735
        %v746 = vmul.f32 %v575, %v735
        %v747 = vmul.f32 %v576, %v735
        %v748 = vmul.f32 %v577, %v735
        %v749 = vmul.f32 %v578, %v735
        %v750 = vmul.f32 %v579, %v735
        %v751 = vmul.f32 %v580, %v735
        %v752 = vmul.f32 %v581, %v735
        %vm769 = vcmask 1045504
        %v770 = vrot.slane %v737, 2
        %v771 = vrot.slane %v738, 2
        %v772 = vsel %vm769, %v770, %v771
        %v773 = vrot.slane %v739, 2
        %v774 = vrot.slane %v740, 2
        %v775 = vsel %vm769, %v773, %v774
        %v776 = vrot.slane %v741, 2
        %v777 = vrot.slane %v742, 2
        %v778 = vsel %vm769, %v776, %v777
        %v779 = vrot.slane %v743, 2
        %v780 = vrot.slane %v744, 2
        %v781 = vsel %vm769, %v779, %v780
        %v782 = vrot.slane %v745, 2
        %v783 = vrot.slane %v746, 2
        %v784 = vsel %vm769, %v782, %v783
        %v785 = vrot.slane %v747, 2
        %v786 = vrot.slane %v748, 2
        %v787 = vsel %vm769, %v785, %v786
        %v788 = vrot.slane %v749, 2
        %v789 = vrot.slane %v750, 2
        %v790 = vsel %vm769, %v788, %v789
        %v791 = vrot.slane %v751, 2
        %v792 = vrot.slane %v752, 2
        %v793 = vsel %vm769, %v791, %v792
        %v810 = vadd.f32 %v713, %v772
        %v811 = vadd.f32 %v714, %v771
        %v812 = vadd.f32 %v715, %v775
        %v813 = vadd.f32 %v716, %v774
        %v814 = vadd.f32 %v717, %v778
        %v815 = vadd.f32 %v718, %v777
        %v816 = vadd.f32 %v719, %v781
        %v817 = vadd.f32 %v720, %v780
        %v818 = vadd.f32 %v721, %v784
        %v819 = vadd.f32 %v722, %v783
        %v820 = vadd.f32 %v723, %v787
        %v821 = vadd.f32 %v724, %v786
        %v822 = vadd.f32 %v725, %v790
        %v823 = vadd.f32 %v726, %v789
        %v824 = vadd.f32 %v727, %v793
        %v825 = vadd.f32 %v728, %v792
        %v826 = vlaneseq
        %v827 = vshrl.u32 %v826, 7
        %v828 = vsub.s32 3, %v827
        %v829 = vrot.slane %v590, %v828
        %831 = vrot.lane.b32.xlu0 %v829, 16
        %v832 = vpop.permute.xlu0 %831
        %v834 = vmul.f32 %v568, %v832
        %v835 = vmul.f32 %v569, %v832
        %v836 = vmul.f32 %v570, %v832
        %v837 = vmul.f32 %v571, %v832
        %v838 = vmul.f32 %v572, %v832
        %v839 = vmul.f32 %v573, %v832
        %v840 = vmul.f32 %v574, %v832
        %v841 = vmul.f32 %v575, %v832
        %v842 = vmul.f32 %v576, %v832
        %v843 = vmul.f32 %v577, %v832
        %v844 = vmul.f32 %v578, %v832
        %v845 = vmul.f32 %v579, %v832
        %v846 = vmul.f32 %v580, %v832
        %v847 = vmul.f32 %v581, %v832
        %v848 = vmul.f32 %v582, %v832
        %v849 = vmul.f32 %v583, %v832
        %v850 = vadd.f32 %v810, %v834
        %v851 = vadd.f32 %v811, %v835
        %v852 = vadd.f32 %v812, %v836
        %v853 = vadd.f32 %v813, %v837
        %v854 = vadd.f32 %v814, %v838
        %v855 = vadd.f32 %v815, %v839
        %v856 = vadd.f32 %v816, %v840
        %v857 = vadd.f32 %v817, %v841
        %v858 = vadd.f32 %v818, %v842
        %v859 = vadd.f32 %v819, %v843
        %v860 = vadd.f32 %v820, %v844
        %v861 = vadd.f32 %v821, %v845
        %v862 = vadd.f32 %v822, %v846
        %v863 = vadd.f32 %v823, %v847
        %v864 = vadd.f32 %v824, %v848
        %v865 = vadd.f32 %v825, %v849
        %v866 = vlaneseq
        %v867 = vshrl.u32 %v866, 7
        %v868 = vsub.s32 4, %v867
        %v869 = vrot.slane %v590, %v868
        %871 = vrot.lane.b32.xlu0 %v869, 16
        %v872 = vpop.permute.xlu0 %871
        %v874 = vmul.f32 %v568, %v872
        %v875 = vmul.f32 %v569, %v872
        %v876 = vmul.f32 %v570, %v872
        %v877 = vmul.f32 %v571, %v872
        %v878 = vmul.f32 %v572, %v872
        %v879 = vmul.f32 %v573, %v872
        %v880 = vmul.f32 %v574, %v872
        %v881 = vmul.f32 %v575, %v872
        %v882 = vmul.f32 %v576, %v872
        %v883 = vmul.f32 %v577, %v872
        %v884 = vmul.f32 %v578, %v872
        %v885 = vmul.f32 %v579, %v872
        %v886 = vmul.f32 %v580, %v872
        %v887 = vmul.f32 %v581, %v872
        %v888 = vmul.f32 %v582, %v872
        %v889 = vmul.f32 %v583, %v872
        %v906 = vrot.slane %v874, 1
        %v907 = vrot.slane %v875, 1
        %v908 = vsel %vm672, %v906, %v907
        %v909 = vrot.slane %v876, 1
        %v910 = vrot.slane %v877, 1
        %v911 = vsel %vm672, %v909, %v910
        %v912 = vrot.slane %v878, 1
        %v913 = vrot.slane %v879, 1
        %v914 = vsel %vm672, %v912, %v913
        %v915 = vrot.slane %v880, 1
        %v916 = vrot.slane %v881, 1
        %v917 = vsel %vm672, %v915, %v916
        %v918 = vrot.slane %v882, 1
        %v919 = vrot.slane %v883, 1
        %v920 = vsel %vm672, %v918, %v919
        %v921 = vrot.slane %v884, 1
        %v922 = vrot.slane %v885, 1
        %v923 = vsel %vm672, %v921, %v922
        %v924 = vrot.slane %v886, 1
        %v925 = vrot.slane %v887, 1
        %v926 = vsel %vm672, %v924, %v925
        %v927 = vrot.slane %v888, 1
        %v928 = vrot.slane %v889, 1
        %v929 = vsel %vm672, %v927, %v928
        %v946 = vadd.f32 %v850, %v908
        %v947 = vadd.f32 %v851, %v907
        %v948 = vadd.f32 %v852, %v911
        %v949 = vadd.f32 %v853, %v910
        %v950 = vadd.f32 %v854, %v914
        %v951 = vadd.f32 %v855, %v913
        %v952 = vadd.f32 %v856, %v917
        %v953 = vadd.f32 %v857, %v916
        %v954 = vadd.f32 %v858, %v920
        %v955 = vadd.f32 %v859, %v919
        %v956 = vadd.f32 %v860, %v923
        %v957 = vadd.f32 %v861, %v922
        %v958 = vadd.f32 %v862, %v926
        %v959 = vadd.f32 %v863, %v925
        %v960 = vadd.f32 %v864, %v929
        %v961 = vadd.f32 %v865, %v928
        %v962 = vlaneseq
        %v963 = vshrl.u32 %v962, 7
        %v964 = vsub.s32 5, %v963
        %v965 = vrot.slane %v590, %v964
        %967 = vrot.lane.b32.xlu0 %v965, 16
        %v968 = vpop.permute.xlu0 %967
        %v970 = vmul.f32 %v568, %v968
        %v971 = vmul.f32 %v569, %v968
        %v972 = vmul.f32 %v570, %v968
        %v973 = vmul.f32 %v571, %v968
        %v974 = vmul.f32 %v572, %v968
        %v975 = vmul.f32 %v573, %v968
        %v976 = vmul.f32 %v574, %v968
        %v977 = vmul.f32 %v575, %v968
        %v978 = vmul.f32 %v576, %v968
        %v979 = vmul.f32 %v577, %v968
        %v980 = vmul.f32 %v578, %v968
        %v981 = vmul.f32 %v579, %v968
        %v982 = vmul.f32 %v580, %v968
        %v983 = vmul.f32 %v581, %v968
        %v984 = vmul.f32 %v582, %v968
        %v985 = vmul.f32 %v583, %v968
        %v1002 = vrot.slane %v970, 2
        %v1003 = vrot.slane %v971, 2
        %v1004 = vsel %vm769, %v1002, %v1003
        %v1005 = vrot.slane %v972, 2
        %v1006 = vrot.slane %v973, 2
        %v1007 = vsel %vm769, %v1005, %v1006
        %v1008 = vrot.slane %v974, 2
        %v1009 = vrot.slane %v975, 2
        %v1010 = vsel %vm769, %v1008, %v1009
        %v1011 = vrot.slane %v976, 2
        %v1012 = vrot.slane %v977, 2
        %v1013 = vsel %vm769, %v1011, %v1012
        %v1014 = vrot.slane %v978, 2
        %v1015 = vrot.slane %v979, 2
        %v1016 = vsel %vm769, %v1014, %v1015
        %v1017 = vrot.slane %v980, 2
        %v1018 = vrot.slane %v981, 2
        %v1019 = vsel %vm769, %v1017, %v1018
        %v1020 = vrot.slane %v982, 2
        %v1021 = vrot.slane %v983, 2
        %v1022 = vsel %vm769, %v1020, %v1021
        %v1023 = vrot.slane %v984, 2
        %v1024 = vrot.slane %v985, 2
        %v1025 = vsel %vm769, %v1023, %v1024
        %v1042 = vadd.f32 %v946, %v1004
        %v1043 = vadd.f32 %v947, %v1003
        %v1044 = vadd.f32 %v948, %v1007
        %v1045 = vadd.f32 %v949, %v1006
        %v1046 = vadd.f32 %v950, %v1010
        %v1047 = vadd.f32 %v951, %v1009
        %v1048 = vadd.f32 %v952, %v1013
        %v1049 = vadd.f32 %v953, %v1012
        %v1050 = vadd.f32 %v954, %v1016
        %v1051 = vadd.f32 %v955, %v1015
        %v1052 = vadd.f32 %v956, %v1019
        %v1053 = vadd.f32 %v957, %v1018
        %v1054 = vadd.f32 %v958, %v1022
        %v1055 = vadd.f32 %v959, %v1021
        %v1056 = vadd.f32 %v960, %v1025
        %v1057 = vadd.f32 %v961, %v1024
        %v1058 = vlaneseq
        %v1059 = vshrl.u32 %v1058, 7
        %v1060 = vsub.s32 6, %v1059
        %v1061 = vrot.slane %v590, %v1060
        %1063 = vrot.lane.b32.xlu0 %v1061, 16
        %v1064 = vpop.permute.xlu0 %1063
        %v1066 = vmul.f32 %v570, %v1064
        %v1067 = vmul.f32 %v571, %v1064
        %v1068 = vmul.f32 %v572, %v1064
        %v1069 = vmul.f32 %v573, %v1064
        %v1070 = vmul.f32 %v574, %v1064
        %v1071 = vmul.f32 %v575, %v1064
        %v1072 = vmul.f32 %v576, %v1064
        %v1073 = vmul.f32 %v577, %v1064
        %v1074 = vmul.f32 %v578, %v1064
        %v1075 = vmul.f32 %v579, %v1064
        %v1076 = vmul.f32 %v580, %v1064
        %v1077 = vmul.f32 %v581, %v1064
        %v1078 = vmul.f32 %v582, %v1064
        %v1079 = vmul.f32 %v583, %v1064
        %v1080 = vmul.f32 %v584, %v1064
        %v1081 = vmul.f32 %v585, %v1064
        %v1082 = vadd.f32 %v1042, %v1066
        %v1083 = vadd.f32 %v1043, %v1067
        %v1084 = vadd.f32 %v1044, %v1068
        %v1085 = vadd.f32 %v1045, %v1069
        %v1086 = vadd.f32 %v1046, %v1070
        %v1087 = vadd.f32 %v1047, %v1071
        %v1088 = vadd.f32 %v1048, %v1072
        %v1089 = vadd.f32 %v1049, %v1073
        %v1090 = vadd.f32 %v1050, %v1074
        %v1091 = vadd.f32 %v1051, %v1075
        %v1092 = vadd.f32 %v1052, %v1076
        %v1093 = vadd.f32 %v1053, %v1077
        %v1094 = vadd.f32 %v1054, %v1078
        %v1095 = vadd.f32 %v1055, %v1079
        %v1096 = vadd.f32 %v1056, %v1080
        %v1097 = vadd.f32 %v1057, %v1081
        %v1098 = vlaneseq
        %v1099 = vshrl.u32 %v1098, 7
        %v1100 = vsub.s32 7, %v1099
        %v1101 = vrot.slane %v590, %v1100
        %1103 = vrot.lane.b32.xlu0 %v1101, 16
        %v1104 = vpop.permute.xlu0 %1103
        %v1106 = vmul.f32 %v570, %v1104
        %v1107 = vmul.f32 %v571, %v1104
        %v1108 = vmul.f32 %v572, %v1104
        %v1109 = vmul.f32 %v573, %v1104
        %v1110 = vmul.f32 %v574, %v1104
        %v1111 = vmul.f32 %v575, %v1104
        %v1112 = vmul.f32 %v576, %v1104
        %v1113 = vmul.f32 %v577, %v1104
        %v1114 = vmul.f32 %v578, %v1104
        %v1115 = vmul.f32 %v579, %v1104
        %v1116 = vmul.f32 %v580, %v1104
        %v1117 = vmul.f32 %v581, %v1104
        %v1118 = vmul.f32 %v582, %v1104
        %v1119 = vmul.f32 %v583, %v1104
        %v1120 = vmul.f32 %v584, %v1104
        %v1121 = vmul.f32 %v585, %v1104
        %v1138 = vrot.slane %v1106, 1
        %v1139 = vrot.slane %v1107, 1
        %v1140 = vsel %vm672, %v1138, %v1139
        %v1141 = vrot.slane %v1108, 1
        %v1142 = vrot.slane %v1109, 1
        %v1143 = vsel %vm672, %v1141, %v1142
        %v1144 = vrot.slane %v1110, 1
        %v1145 = vrot.slane %v1111, 1
        %v1146 = vsel %vm672, %v1144, %v1145
        %v1147 = vrot.slane %v1112, 1
        %v1148 = vrot.slane %v1113, 1
        %v1149 = vsel %vm672, %v1147, %v1148
        %v1150 = vrot.slane %v1114, 1
        %v1151 = vrot.slane %v1115, 1
        %v1152 = vsel %vm672, %v1150, %v1151
        %v1153 = vrot.slane %v1116, 1
        %v1154 = vrot.slane %v1117, 1
        %v1155 = vsel %vm672, %v1153, %v1154
        %v1156 = vrot.slane %v1118, 1
        %v1157 = vrot.slane %v1119, 1
        %v1158 = vsel %vm672, %v1156, %v1157
        %v1159 = vrot.slane %v1120, 1
        %v1160 = vrot.slane %v1121, 1
        %v1161 = vsel %vm672, %v1159, %v1160
        %v1178 = vadd.f32 %v1082, %v1140
        %v1179 = vadd.f32 %v1083, %v1139
        %v1180 = vadd.f32 %v1084, %v1143
        %v1181 = vadd.f32 %v1085, %v1142
        %v1182 = vadd.f32 %v1086, %v1146
        %v1183 = vadd.f32 %v1087, %v1145
        %v1184 = vadd.f32 %v1088, %v1149
        %v1185 = vadd.f32 %v1089, %v1148
        %v1186 = vadd.f32 %v1090, %v1152
        %v1187 = vadd.f32 %v1091, %v1151
        %v1188 = vadd.f32 %v1092, %v1155
        %v1189 = vadd.f32 %v1093, %v1154
        %v1190 = vadd.f32 %v1094, %v1158
        %v1191 = vadd.f32 %v1095, %v1157
        %v1192 = vadd.f32 %v1096, %v1161
        %v1193 = vadd.f32 %v1097, %v1160
        %v1194 = vlaneseq
        %v1195 = vshrl.u32 %v1194, 7
        %v1196 = vsub.s32 0, %v1195
        %v1197 = vrot.slane %v591, %v1196
        %1199 = vrot.lane.b32.xlu0 %v1197, 16
        %v1200 = vpop.permute.xlu0 %1199
        %v1202 = vmul.f32 %v570, %v1200
        %v1203 = vmul.f32 %v571, %v1200
        %v1204 = vmul.f32 %v572, %v1200
        %v1205 = vmul.f32 %v573, %v1200
        %v1206 = vmul.f32 %v574, %v1200
        %v1207 = vmul.f32 %v575, %v1200
        %v1208 = vmul.f32 %v576, %v1200
        %v1209 = vmul.f32 %v577, %v1200
        %v1210 = vmul.f32 %v578, %v1200
        %v1211 = vmul.f32 %v579, %v1200
        %v1212 = vmul.f32 %v580, %v1200
        %v1213 = vmul.f32 %v581, %v1200
        %v1214 = vmul.f32 %v582, %v1200
        %v1215 = vmul.f32 %v583, %v1200
        %v1216 = vmul.f32 %v584, %v1200
        %v1217 = vmul.f32 %v585, %v1200
        %v1234 = vrot.slane %v1202, 2
        %v1235 = vrot.slane %v1203, 2
        %v1236 = vsel %vm769, %v1234, %v1235
        %v1237 = vrot.slane %v1204, 2
        %v1238 = vrot.slane %v1205, 2
        %v1239 = vsel %vm769, %v1237, %v1238
        %v1240 = vrot.slane %v1206, 2
        %v1241 = vrot.slane %v1207, 2
        %v1242 = vsel %vm769, %v1240, %v1241
        %v1243 = vrot.slane %v1208, 2
        %v1244 = vrot.slane %v1209, 2
        %v1245 = vsel %vm769, %v1243, %v1244
        %v1246 = vrot.slane %v1210, 2
        %v1247 = vrot.slane %v1211, 2
        %v1248 = vsel %vm769, %v1246, %v1247
        %v1249 = vrot.slane %v1212, 2
        %v1250 = vrot.slane %v1213, 2
        %v1251 = vsel %vm769, %v1249, %v1250
        %v1252 = vrot.slane %v1214, 2
        %v1253 = vrot.slane %v1215, 2
        %v1254 = vsel %vm769, %v1252, %v1253
        %v1255 = vrot.slane %v1216, 2
        %v1256 = vrot.slane %v1217, 2
        %v1257 = vsel %vm769, %v1255, %v1256
        %v1274 = vadd.f32 %v1178, %v1236
        %v1275 = vadd.f32 %v1179, %v1235
        %v1276 = vadd.f32 %v1180, %v1239
        %v1277 = vadd.f32 %v1181, %v1238
        %v1278 = vadd.f32 %v1182, %v1242
        %v1279 = vadd.f32 %v1183, %v1241
        %v1280 = vadd.f32 %v1184, %v1245
        %v1281 = vadd.f32 %v1185, %v1244
        %v1282 = vadd.f32 %v1186, %v1248
        %v1283 = vadd.f32 %v1187, %v1247
        %v1284 = vadd.f32 %v1188, %v1251
        %v1285 = vadd.f32 %v1189, %v1250
        %v1286 = vadd.f32 %v1190, %v1254
        %v1287 = vadd.f32 %v1191, %v1253
        %v1288 = vadd.f32 %v1192, %v1257
        %v1289 = vadd.f32 %v1193, %v1256
        %v1290 = vmax.f32 %v1274, 0.0
        %v1291 = vmax.f32 %v1275, 0.0
        %v1292 = vmax.f32 %v1276, 0.0
        %v1293 = vmax.f32 %v1277, 0.0
        %v1294 = vmax.f32 %v1278, 0.0
        %v1295 = vmax.f32 %v1279, 0.0
        %v1296 = vmax.f32 %v1280, 0.0
        %v1297 = vmax.f32 %v1281, 0.0
        %v1298 = vmax.f32 %v1282, 0.0
        %v1299 = vmax.f32 %v1283, 0.0
        %v1300 = vmax.f32 %v1284, 0.0
        %v1301 = vmax.f32 %v1285, 0.0
        %v1302 = vmax.f32 %v1286, 0.0
        %v1303 = vmax.f32 %v1287, 0.0
        %v1304 = vmax.f32 %v1288, 0.0
        %v1305 = vmax.f32 %v1289, 0.0
        %v1306 = vld [vmem:[%s3] sm:$0xff]
        %v1307 = vld [vmem:[%s3 + $0x8] sm:$0x1]
        %v1308 = vlaneseq
        %v1309 = vshrl.u32 %v1308, 7
        %v1310 = vsub.s32 0, %v1309
        %v1311 = vrot.slane %v1306, %v1310
        %1313 = vrot.lane.b32.xlu0 %v1311, 32
        %v1314 = vpop.permute.xlu0 %1313
        %v1316 = vmul.f32 %v562, %v1314
        %v1317 = vmul.f32 %v564, %v1314
        %v1318 = vmul.f32 %v566, %v1314
        %v1319 = vmul.f32 %v568, %v1314
        %v1320 = vmul.f32 %v570, %v1314
        %v1321 = vmul.f32 %v572, %v1314
        %v1322 = vmul.f32 %v574, %v1314
        %v1323 = vmul.f32 %v576, %v1314
        %v1324 = vadd.f32 %v1316, 0.0
        %v1325 = vadd.f32 %v1317, 0.0
        %v1326 = vadd.f32 %v1318, 0.0
        %v1327 = vadd.f32 %v1319, 0.0
        %v1328 = vadd.f32 %v1320, 0.0
        %v1329 = vadd.f32 %v1321, 0.0
        %v1330 = vadd.f32 %v1322, 0.0
        %v1331 = vadd.f32 %v1323, 0.0
        %v1332 = vlaneseq
        %v1333 = vshrl.u32 %v1332, 7
        %v1334 = vsub.s32 1, %v1333
        %v1335 = vrot.slane %v1306, %v1334
        %1337 = vrot.lane.b32.xlu0 %v1335, 32
        %v1338 = vpop.permute.xlu0 %1337
        %v1340 = vmul.f32 %v562, %v1338
        %v1341 = vmul.f32 %v563, %v1338
        %v1342 = vmul.f32 %v564, %v1338
        %v1343 = vmul.f32 %v565, %v1338
        %v1344 = vmul.f32 %v566, %v1338
        %v1345 = vmul.f32 %v567, %v1338
        %v1346 = vmul.f32 %v568, %v1338
        %v1347 = vmul.f32 %v569, %v1338
        %v1348 = vmul.f32 %v570, %v1338
        %v1349 = vmul.f32 %v571, %v1338
        %v1350 = vmul.f32 %v572, %v1338
        %v1351 = vmul.f32 %v573, %v1338
        %v1352 = vmul.f32 %v574, %v1338
        %v1353 = vmul.f32 %v575, %v1338
        %v1354 = vmul.f32 %v576, %v1338
        %v1355 = vmul.f32 %v577, %v1338
        %vm1372 = vcmask 1044480
        %v1373 = vrot.slane %v1340, 3
        %v1374 = vrot.slane %v1341, 3
        %v1375 = vsel %vm1372, %v1373, %v1374
        %v1376 = vrot.slane %v1342, 3
        %v1377 = vrot.slane %v1343, 3
        %v1378 = vsel %vm1372, %v1376, %v1377
        %v1379 = vrot.slane %v1344, 3
        %v1380 = vrot.slane %v1345, 3
        %v1381 = vsel %vm1372, %v1379, %v1380
        %v1382 = vrot.slane %v1346, 3
        %v1383 = vrot.slane %v1347, 3
        %v1384 = vsel %vm1372, %v1382, %v1383
        %v1385 = vrot.slane %v1348, 3
        %v1386 = vrot.slane %v1349, 3
        %v1387 = vsel %vm1372, %v1385, %v1386
        %v1388 = vrot.slane %v1350, 3
        %v1389 = vrot.slane %v1351, 3
        %v1390 = vsel %vm1372, %v1388, %v1389
        %v1391 = vrot.slane %v1352, 3
        %v1392 = vrot.slane %v1353, 3
        %v1393 = vsel %vm1372, %v1391, %v1392
        %v1394 = vrot.slane %v1354, 3
        %v1395 = vrot.slane %v1355, 3
        %v1396 = vsel %vm1372, %v1394, %v1395
        %v1405 = vadd.f32 %v1324, %v1375
        %v1406 = vadd.f32 %v1325, %v1378
        %v1407 = vadd.f32 %v1326, %v1381
        %v1408 = vadd.f32 %v1327, %v1384
        %v1409 = vadd.f32 %v1328, %v1387
        %v1410 = vadd.f32 %v1329, %v1390
        %v1411 = vadd.f32 %v1330, %v1393
        %v1412 = vadd.f32 %v1331, %v1396
        %v1413 = vlaneseq
        %v1414 = vshrl.u32 %v1413, 7
        %v1415 = vsub.s32 2, %v1414
        %v1416 = vrot.slane %v1306, %v1415
        %1418 = vrot.lane.b32.xlu0 %v1416, 32
        %v1419 = vpop.permute.xlu0 %1418
        %v1421 = vmul.f32 %v562, %v1419
        %v1422 = vmul.f32 %v563, %v1419
        %v1423 = vmul.f32 %v564, %v1419
        %v1424 = vmul.f32 %v565, %v1419
        %v1425 = vmul.f32 %v566, %v1419
        %v1426 = vmul.f32 %v567, %v1419
        %v1427 = vmul.f32 %v568, %v1419
        %v1428 = vmul.f32 %v569, %v1419
        %v1429 = vmul.f32 %v570, %v1419
        %v1430 = vmul.f32 %v571, %v1419
        %v1431 = vmul.f32 %v572, %v1419
        %v1432 = vmul.f32 %v573, %v1419
        %v1433 = vmul.f32 %v574, %v1419
        %v1434 = vmul.f32 %v575, %v1419
        %v1435 = vmul.f32 %v576, %v1419
        %v1436 = vmul.f32 %v577, %v1419
        %vm1453 = vcmask 1041408
        %v1454 = vrot.slane %v1421, 6
        %v1455 = vrot.slane %v1422, 6
        %v1456 = vsel %vm1453, %v1454, %v1455
        %v1457 = vrot.slane %v1423, 6
        %v1458 = vrot.slane %v1424, 6
        %v1459 = vsel %vm1453, %v1457, %v1458
        %v1460 = vrot.slane %v1425, 6
        %v1461 = vrot.slane %v1426, 6
        %v1462 = vsel %vm1453, %v1460, %v1461
        %v1463 = vrot.slane %v1427, 6
        %v1464 = vrot.slane %v1428, 6
        %v1465 = vsel %vm1453, %v1463, %v1464
        %v1466 = vrot.slane %v1429, 6
        %v1467 = vrot.slane %v1430, 6
        %v1468 = vsel %vm1453, %v1466, %v1467
        %v1469 = vrot.slane %v1431, 6
        %v1470 = vrot.slane %v1432, 6
        %v1471 = vsel %vm1453, %v1469, %v1470
        %v1472 = vrot.slane %v1433, 6
        %v1473 = vrot.slane %v1434, 6
        %v1474 = vsel %vm1453, %v1472, %v1473
        %v1475 = vrot.slane %v1435, 6
        %v1476 = vrot.slane %v1436, 6
        %v1477 = vsel %vm1453, %v1475, %v1476
        %v1486 = vadd.f32 %v1405, %v1456
        %v1487 = vadd.f32 %v1406, %v1459
        %v1488 = vadd.f32 %v1407, %v1462
        %v1489 = vadd.f32 %v1408, %v1465
        %v1490 = vadd.f32 %v1409, %v1468
        %v1491 = vadd.f32 %v1410, %v1471
        %v1492 = vadd.f32 %v1411, %v1474
        %v1493 = vadd.f32 %v1412, %v1477
        %v1494 = vlaneseq
        %v1495 = vshrl.u32 %v1494, 7
        %v1496 = vsub.s32 3, %v1495
        %v1497 = vrot.slane %v1306, %v1496
        %1499 = vrot.lane.b32.xlu0 %v1497, 32
        %v1500 = vpop.permute.xlu0 %1499
        %v1502 = vmul.f32 %v568, %v1500
        %v1503 = vmul.f32 %v570, %v1500
        %v1504 = vmul.f32 %v572, %v1500
        %v1505 = vmul.f32 %v574, %v1500
        %v1506 = vmul.f32 %v576, %v1500
        %v1507 = vmul.f32 %v578, %v1500
        %v1508 = vmul.f32 %v580, %v1500
        %v1509 = vmul.f32 %v582, %v1500
        %v1510 = vadd.f32 %v1486, %v1502
        %v1511 = vadd.f32 %v1487, %v1503
        %v1512 = vadd.f32 %v1488, %v1504
        %v1513 = vadd.f32 %v1489, %v1505
        %v1514 = vadd.f32 %v1490, %v1506
        %v1515 = vadd.f32 %v1491, %v1507
        %v1516 = vadd.f32 %v1492, %v1508
        %v1517 = vadd.f32 %v1493, %v1509
        %v1518 = vlaneseq
        %v1519 = vshrl.u32 %v1518, 7
        %v1520 = vsub.s32 4, %v1519
        %v1521 = vrot.slane %v1306, %v1520
        %1523 = vrot.lane.b32.xlu0 %v1521, 32
        %v1524 = vpop.permute.xlu0 %1523
        %v1526 = vmul.f32 %v568, %v1524
        %v1527 = vmul.f32 %v569, %v1524
        %v1528 = vmul.f32 %v570, %v1524
        %v1529 = vmul.f32 %v571, %v1524
        %v1530 = vmul.f32 %v572, %v1524
        %v1531 = vmul.f32 %v573, %v1524
        %v1532 = vmul.f32 %v574, %v1524
        %v1533 = vmul.f32 %v575, %v1524
        %v1534 = vmul.f32 %v576, %v1524
        %v1535 = vmul.f32 %v577, %v1524
        %v1536 = vmul.f32 %v578, %v1524
        %v1537 = vmul.f32 %v579, %v1524
        %v1538 = vmul.f32 %v580, %v1524
        %v1539 = vmul.f32 %v581, %v1524
        %v1540 = vmul.f32 %v582, %v1524
        %v1541 = vmul.f32 %v583, %v1524
        %v1558 = vrot.slane %v1526, 3
        %v1559 = vrot.slane %v1527, 3
        %v1560 = vsel %vm1372, %v1558, %v1559
        %v1561 = vrot.slane %v1528, 3
        %v1562 = vrot.slane %v1529, 3
        %v1563 = vsel %vm1372, %v1561, %v1562
        %v1564 = vrot.slane %v1530, 3
        %v1565 = vrot.slane %v1531, 3
        %v1566 = vsel %vm1372, %v1564, %v1565
        %v1567 = vrot.slane %v1532, 3
        %v1568 = vrot.slane %v1533, 3
        %v1569 = vsel %vm1372, %v1567, %v1568
        %v1570 = vrot.slane %v1534, 3
        %v1571 = vrot.slane %v1535, 3
        %v1572 = vsel %vm1372, %v1570, %v1571
        %v1573 = vrot.slane %v1536, 3
        %v1574 = vrot.slane %v1537, 3
        %v1575 = vsel %vm1372, %v1573, %v1574
        %v1576 = vrot.slane %v1538, 3
        %v1577 = vrot.slane %v1539, 3
        %v1578 = vsel %vm1372, %v1576, %v1577
        %v1579 = vrot.slane %v1540, 3
        %v1580 = vrot.slane %v1541, 3
        %v1581 = vsel %vm1372, %v1579, %v1580
        %v1590 = vadd.f32 %v1510, %v1560
        %v1591 = vadd.f32 %v1511, %v1563
        %v1592 = vadd.f32 %v1512, %v1566
        %v1593 = vadd.f32 %v1513, %v1569
        %v1594 = vadd.f32 %v1514, %v1572
        %v1595 = vadd.f32 %v1515, %v1575
        %v1596 = vadd.f32 %v1516, %v1578
        %v1597 = vadd.f32 %v1517, %v1581
        %v1598 = vlaneseq
        %v1599 = vshrl.u32 %v1598, 7
        %v1600 = vsub.s32 5, %v1599
        %v1601 = vrot.slane %v1306, %v1600
        %1603 = vrot.lane.b32.xlu0 %v1601, 32
        %v1604 = vpop.permute.xlu0 %1603
        %v1606 = vmul.f32 %v568, %v1604
        %v1607 = vmul.f32 %v569, %v1604
        %v1608 = vmul.f32 %v570, %v1604
        %v1609 = vmul.f32 %v571, %v1604
        %v1610 = vmul.f32 %v572, %v1604
        %v1611 = vmul.f32 %v573, %v1604
        %v1612 = vmul.f32 %v574, %v1604
        %v1613 = vmul.f32 %v575, %v1604
        %v1614 = vmul.f32 %v576, %v1604
        %v1615 = vmul.f32 %v577, %v1604
        %v1616 = vmul.f32 %v578, %v1604
        %v1617 = vmul.f32 %v579, %v1604
        %v1618 = vmul.f32 %v580, %v1604
        %v1619 = vmul.f32 %v581, %v1604
        %v1620 = vmul.f32 %v582, %v1604
        %v1621 = vmul.f32 %v583, %v1604
        %v1638 = vrot.slane %v1606, 6
        %v1639 = vrot.slane %v1607, 6
        %v1640 = vsel %vm1453, %v1638, %v1639
        %v1641 = vrot.slane %v1608, 6
        %v1642 = vrot.slane %v1609, 6
        %v1643 = vsel %vm1453, %v1641, %v1642
        %v1644 = vrot.slane %v1610, 6
        %v1645 = vrot.slane %v1611, 6
        %v1646 = vsel %vm1453, %v1644, %v1645
        %v1647 = vrot.slane %v1612, 6
        %v1648 = vrot.slane %v1613, 6
        %v1649 = vsel %vm1453, %v1647, %v1648
        %v1650 = vrot.slane %v1614, 6
        %v1651 = vrot.slane %v1615, 6
        %v1652 = vsel %vm1453, %v1650, %v1651
        %v1653 = vrot.slane %v1616, 6
        %v1654 = vrot.slane %v1617, 6
        %v1655 = vsel %vm1453, %v1653, %v1654
        %v1656 = vrot.slane %v1618, 6
        %v1657 = vrot.slane %v1619, 6
        %v1658 = vsel %vm1453, %v1656, %v1657
        %v1659 = vrot.slane %v1620, 6
        %v1660 = vrot.slane %v1621, 6
        %v1661 = vsel %vm1453, %v1659, %v1660
        %v1670 = vadd.f32 %v1590, %v1640
        %v1671 = vadd.f32 %v1591, %v1643
        %v1672 = vadd.f32 %v1592, %v1646
        %v1673 = vadd.f32 %v1593, %v1649
        %v1674 = vadd.f32 %v1594, %v1652
        %v1675 = vadd.f32 %v1595, %v1655
        %v1676 = vadd.f32 %v1596, %v1658
        %v1677 = vadd.f32 %v1597, %v1661
        %v1678 = vlaneseq
        %v1679 = vshrl.u32 %v1678, 7
        %v1680 = vsub.s32 6, %v1679
        %v1681 = vrot.slane %v1306, %v1680
        %1683 = vrot.lane.b32.xlu0 %v1681, 32
        %v1684 = vpop.permute.xlu0 %1683
        %v1686 = vmul.f32 %v574, %v1684
        %v1687 = vmul.f32 %v576, %v1684
        %v1688 = vmul.f32 %v578, %v1684
        %v1689 = vmul.f32 %v580, %v1684
        %v1690 = vmul.f32 %v582, %v1684
        %v1691 = vmul.f32 %v584, %v1684
        %v1692 = vmul.f32 %v586, %v1684
        %v1693 = vmul.f32 %v588, %v1684
        %v1694 = vadd.f32 %v1670, %v1686
        %v1695 = vadd.f32 %v1671, %v1687
        %v1696 = vadd.f32 %v1672, %v1688
        %v1697 = vadd.f32 %v1673, %v1689
        %v1698 = vadd.f32 %v1674, %v1690
        %v1699 = vadd.f32 %v1675, %v1691
        %v1700 = vadd.f32 %v1676, %v1692
        %v1701 = vadd.f32 %v1677, %v1693
        %v1702 = vlaneseq
        %v1703 = vshrl.u32 %v1702, 7
        %v1704 = vsub.s32 7, %v1703
        %v1705 = vrot.slane %v1306, %v1704
        %1707 = vrot.lane.b32.xlu0 %v1705, 32
        %v1708 = vpop.permute.xlu0 %1707
        %v1710 = vmul.f32 %v574, %v1708
        %v1711 = vmul.f32 %v575, %v1708
        %v1712 = vmul.f32 %v576, %v1708
        %v1713 = vmul.f32 %v577, %v1708
        %v1714 = vmul.f32 %v578, %v1708
        %v1715 = vmul.f32 %v579, %v1708
        %v1716 = vmul.f32 %v580, %v1708
        %v1717 = vmul.f32 %v581, %v1708
        %v1718 = vmul.f32 %v582, %v1708
        %v1719 = vmul.f32 %v583, %v1708
        %v1720 = vmul.f32 %v584, %v1708
        %v1721 = vmul.f32 %v585, %v1708
        %v1722 = vmul.f32 %v586, %v1708
        %v1723 = vmul.f32 %v587, %v1708
        %v1724 = vmul.f32 %v588, %v1708
        %v1725 = vmul.f32 %v589, %v1708
        %v1742 = vrot.slane %v1710, 3
        %v1743 = vrot.slane %v1711, 3
        %v1744 = vsel %vm1372, %v1742, %v1743
        %v1745 = vrot.slane %v1712, 3
        %v1746 = vrot.slane %v1713, 3
        %v1747 = vsel %vm1372, %v1745, %v1746
        %v1748 = vrot.slane %v1714, 3
        %v1749 = vrot.slane %v1715, 3
        %v1750 = vsel %vm1372, %v1748, %v1749
        %v1751 = vrot.slane %v1716, 3
        %v1752 = vrot.slane %v1717, 3
        %v1753 = vsel %vm1372, %v1751, %v1752
        %v1754 = vrot.slane %v1718, 3
        %v1755 = vrot.slane %v1719, 3
        %v1756 = vsel %vm1372, %v1754, %v1755
        %v1757 = vrot.slane %v1720, 3
        %v1758 = vrot.slane %v1721, 3
        %v1759 = vsel %vm1372, %v1757, %v1758
        %v1760 = vrot.slane %v1722, 3
        %v1761 = vrot.slane %v1723, 3
        %v1762 = vsel %vm1372, %v1760, %v1761
        %v1763 = vrot.slane %v1724, 3
        %v1764 = vrot.slane %v1725, 3
        %v1765 = vsel %vm1372, %v1763, %v1764
        %v1774 = vadd.f32 %v1694, %v1744
        %v1775 = vadd.f32 %v1695, %v1747
        %v1776 = vadd.f32 %v1696, %v1750
        %v1777 = vadd.f32 %v1697, %v1753
        %v1778 = vadd.f32 %v1698, %v1756
        %v1779 = vadd.f32 %v1699, %v1759
        %v1780 = vadd.f32 %v1700, %v1762
        %v1781 = vadd.f32 %v1701, %v1765
        %v1782 = vlaneseq
        %v1783 = vshrl.u32 %v1782, 7
        %v1784 = vsub.s32 0, %v1783
        %v1785 = vrot.slane %v1307, %v1784
        %1787 = vrot.lane.b32.xlu0 %v1785, 32
        %v1788 = vpop.permute.xlu0 %1787
        %v1790 = vmul.f32 %v574, %v1788
        %v1791 = vmul.f32 %v575, %v1788
        %v1792 = vmul.f32 %v576, %v1788
        %v1793 = vmul.f32 %v577, %v1788
        %v1794 = vmul.f32 %v578, %v1788
        %v1795 = vmul.f32 %v579, %v1788
        %v1796 = vmul.f32 %v580, %v1788
        %v1797 = vmul.f32 %v581, %v1788
        %v1798 = vmul.f32 %v582, %v1788
        %v1799 = vmul.f32 %v583, %v1788
        %v1800 = vmul.f32 %v584, %v1788
        %v1801 = vmul.f32 %v585, %v1788
        %v1802 = vmul.f32 %v586, %v1788
        %v1803 = vmul.f32 %v587, %v1788
        %v1804 = vmul.f32 %v588, %v1788
        %v1805 = vmul.f32 %v589, %v1788
        %v1822 = vrot.slane %v1790, 6
        %v1823 = vrot.slane %v1791, 6
        %v1824 = vsel %vm1453, %v1822, %v1823
        %v1825 = vrot.slane %v1792, 6
        %v1826 = vrot.slane %v1793, 6
        %v1827 = vsel %vm1453, %v1825, %v1826
        %v1828 = vrot.slane %v1794, 6
        %v1829 = vrot.slane %v1795, 6
        %v1830 = vsel %vm1453, %v1828, %v1829
        %v1831 = vrot.slane %v1796, 6
        %v1832 = vrot.slane %v1797, 6
        %v1833 = vsel %vm1453, %v1831, %v1832
        %v1834 = vrot.slane %v1798, 6
        %v1835 = vrot.slane %v1799, 6
        %v1836 = vsel %vm1453, %v1834, %v1835
        %v1837 = vrot.slane %v1800, 6
        %v1838 = vrot.slane %v1801, 6
        %v1839 = vsel %vm1453, %v1837, %v1838
        %v1840 = vrot.slane %v1802, 6
        %v1841 = vrot.slane %v1803, 6
        %v1842 = vsel %vm1453, %v1840, %v1841
        %v1843 = vrot.slane %v1804, 6
        %v1844 = vrot.slane %v1805, 6
        %v1845 = vsel %vm1453, %v1843, %v1844
        %v1854 = vadd.f32 %v1774, %v1824
        %v1855 = vadd.f32 %v1775, %v1827
        %v1856 = vadd.f32 %v1776, %v1830
        %v1857 = vadd.f32 %v1777, %v1833
        %v1858 = vadd.f32 %v1778, %v1836
        %v1859 = vadd.f32 %v1779, %v1839
        %v1860 = vadd.f32 %v1780, %v1842
        %v1861 = vadd.f32 %v1781, %v1845
        %v1862 = vmax.f32 %v1854, 0.0
        %v1863 = vmax.f32 %v1855, 0.0
        %v1864 = vmax.f32 %v1856, 0.0
        %v1865 = vmax.f32 %v1857, 0.0
        %v1866 = vmax.f32 %v1858, 0.0
        %v1867 = vmax.f32 %v1859, 0.0
        %v1868 = vmax.f32 %v1860, 0.0
        %v1869 = vmax.f32 %v1861, 0.0
        %vm1886 = vcmask 1040384
        %v1887 = vrot.slane %v1290, 7
        %v1888 = vrot.slane %v1291, 7
        %v1889 = vsel %vm1886, %v1887, %v1888
        %v1890 = vrot.slane %v1292, 7
        %v1891 = vrot.slane %v1293, 7
        %v1892 = vsel %vm1886, %v1890, %v1891
        %v1893 = vrot.slane %v1294, 7
        %v1894 = vrot.slane %v1295, 7
        %v1895 = vsel %vm1886, %v1893, %v1894
        %v1896 = vrot.slane %v1296, 7
        %v1897 = vrot.slane %v1297, 7
        %v1898 = vsel %vm1886, %v1896, %v1897
        %v1899 = vrot.slane %v1298, 7
        %v1900 = vrot.slane %v1299, 7
        %v1901 = vsel %vm1886, %v1899, %v1900
        %v1902 = vrot.slane %v1300, 7
        %v1903 = vrot.slane %v1301, 7
        %v1904 = vsel %vm1886, %v1902, %v1903
        %v1905 = vrot.slane %v1302, 7
        %v1906 = vrot.slane %v1303, 7
        %v1907 = vsel %vm1886, %v1905, %v1906
        %v1908 = vrot.slane %v1304, 7
        %v1909 = vrot.slane %v1305, 7
        %v1910 = vsel %vm1886, %v1908, %v1909
        %v1935 = vrot.slane %v1862, 5
        %v1936 = vrot.slane %v1863, 5
        %v1937 = vrot.slane %v1864, 5
        %v1938 = vrot.slane %v1865, 5
        %v1939 = vrot.slane %v1866, 5
        %v1940 = vrot.slane %v1867, 5
        %v1941 = vrot.slane %v1868, 5
        %v1942 = vrot.slane %v1869, 5
        %vm1951 = vcmask 130048
        %v1952 = vsel %vm1951, %v568, %v1887
        %v1953 = vsel %vm1951, %v569, %v1889
        %v1954 = vsel %vm1951, %v570, %v1890
        %v1955 = vsel %vm1951, %v571, %v1892
        %v1956 = vsel %vm1951, %v572, %v1893
        %v1957 = vsel %vm1951, %v573, %v1895
        %v1958 = vsel %vm1951, %v574, %v1896
        %v1959 = vsel %vm1951, %v575, %v1898
        %v1960 = vsel %vm1951, %v576, %v1899
        %v1961 = vsel %vm1951, %v577, %v1901
        %v1962 = vsel %vm1951, %v578, %v1902
        %v1963 = vsel %vm1951, %v579, %v1904
        %v1964 = vsel %vm1951, %v580, %v1905
        %v1965 = vsel %vm1951, %v581, %v1907
        %v1966 = vsel %vm1951, %v582, %v1908
        %v1967 = vsel %vm1951, %v583, %v1910
        %vm1968 = vcmask 261120
        %v1969 = vsel %vm1968, %v1952, %v1935
        %v1970 = vsel %vm1968, %v1953, %v1935
        %v1971 = vsel %vm1968, %v1954, %v1936
        %v1972 = vsel %vm1968, %v1955, %v1936
        %v1973 = vsel %vm1968, %v1956, %v1937
        %v1974 = vsel %vm1968, %v1957, %v1937
        %v1975 = vsel %vm1968, %v1958, %v1938
        %v1976 = vsel %vm1968, %v1959, %v1938
        %v1977 = vsel %vm1968, %v1960, %v1939
        %v1978 = vsel %vm1968, %v1961, %v1939
        %v1979 = vsel %vm1968, %v1962, %v1940
        %v1980 = vsel %vm1968, %v1963, %v1940
        %v1981 = vsel %vm1968, %v1964, %v1941
        %v1982 = vsel %vm1968, %v1965, %v1941
        %v1983 = vsel %vm1968, %v1966, %v1942
        %v1984 = vsel %vm1968, %v1967, %v1942
        %v2001 = vrot.slane %v1969, 3
        %v2002 = vrot.slane %v1970, 3
        %v2003 = vsel %vm1372, %v2001, %v2002
        %v2004 = vrot.slane %v1971, 3
        %v2005 = vrot.slane %v1972, 3
        %v2006 = vsel %vm1372, %v2004, %v2005
        %v2007 = vrot.slane %v1973, 3
        %v2008 = vrot.slane %v1974, 3
        %v2009 = vsel %vm1372, %v2007, %v2008
        %v2010 = vrot.slane %v1975, 3
        %v2011 = vrot.slane %v1976, 3
        %v2012 = vsel %vm1372, %v2010, %v2011
        %v2013 = vrot.slane %v1977, 3
        %v2014 = vrot.slane %v1978, 3
        %v2015 = vsel %vm1372, %v2013, %v2014
        %v2016 = vrot.slane %v1979, 3
        %v2017 = vrot.slane %v1980, 3
        %v2018 = vsel %vm1372, %v2016, %v2017
        %v2019 = vrot.slane %v1981, 3
        %v2020 = vrot.slane %v1982, 3
        %v2021 = vsel %vm1372, %v2019, %v2020
        %v2022 = vrot.slane %v1983, 3
        %v2023 = vrot.slane %v1984, 3
        %v2024 = vsel %vm1372, %v2022, %v2023
        %v2033 = vpack.c.bf16 %v2006, %v2003
        %v2034 = vpack.c.bf16 %v2012, %v2009
        %v2035 = vpack.c.bf16 %v2018, %v2015
        %v2036 = vpack.c.bf16 %v2024, %v2021
        %v2037 = vld [vmem:[%s4] sm:$0xf]
        %v2038 = vld [vmem:[%s4 + $0x4] sm:$0xf]
        %v2039 = vld [vmem:[%s4 + $0x8] sm:$0xf]
        %v2040 = vld [vmem:[%s4 + $0xc] sm:$0xf]
        %v2041 = vld [vmem:[%s4 + $0x10] sm:$0xf]
        %v2042 = vld [vmem:[%s4 + $0x14] sm:$0xf]
        %v2049 = vunpack.c.l.b16 %v2037
        %v2050 = vunpack.c.l.b16 %v2038
        %v2051 = vunpack.c.l.b16 %v2039
        %v2052 = vunpack.c.l.b16 %v2040
        %v2053 = vunpack.c.l.b16 %v2041
        %v2054 = vunpack.c.l.b16 %v2042
        %v2055 = vpack.c.b16 %v2050, %v2049
        %v2056 = vpack.c.b16 %v2052, %v2051
        %v2057 = vpack.c.b16 %v2054, %v2053
        %vm2061 = vcmask 392192
        %v2063 = vsel %vm2061, %v2033, 0
        %v2066 = vsel %vm2061, %v2034, 0
        %v2069 = vsel %vm2061, %v2035, 0
        %v2072 = vsel %vm2061, %v2036, 0
        %2074 = vmatprep.subr.bf16.mxu0 0
        %2075 = vmatpush1.bf16.msra.mxu0 %v2055
        %2076 = vmatprep.subr.bf16.mxu0 0
        %2077 = vmatpush1.bf16.msra.mxu0 %v2056
        %2078 = vmatprep.subr.bf16.mxu0 0
        %2079 = vmatpush1.bf16.msra.mxu0 %v2057
        %2080 = vmatprep.subr.bf16.mxu0 0
        %2081 = vmatpush1.bf16.msra.mxu0 0
        %2082 = vmatprep.subr.bf16.mxu0 0
        %2083 = vmatpush1.bf16.msra.mxu0 0
        %2084 = vmatprep.subr.bf16.mxu0 0
        %2085 = vmatpush1.bf16.msra.mxu0 0
        %2086 = vmatprep.subr.bf16.mxu0 0
        %2087 = vmatpush1.bf16.msra.mxu0 0
        %2088 = vmatprep.subr.bf16.mxu0 0
        %2089 = vmatpush1.bf16.msra.mxu0 0
        %2090 = vmatprep.subr.bf16.mxu0 0
        %2091 = vmatpush1.bf16.msra.mxu0 0
        %2092 = vmatprep.subr.bf16.mxu0 0
        %2093 = vmatpush1.bf16.msra.mxu0 0
        %2094 = vmatprep.subr.bf16.mxu0 0
        %2095 = vmatpush1.bf16.msra.mxu0 0
        %2096 = vmatprep.subr.bf16.mxu0 0
        %2097 = vmatpush1.bf16.msra.mxu0 0
        %2098 = vmatprep.subr.bf16.mxu0 0
        %2099 = vmatpush1.bf16.msra.mxu0 0
        %2100 = vmatprep.subr.bf16.mxu0 0
        %2101 = vmatpush1.bf16.msra.mxu0 0
        %2102 = vmatprep.subr.bf16.mxu0 0
        %2103 = vmatpush1.bf16.msra.mxu0 0
        %2104 = vmatprep.subr.bf16.mxu0 0
        %2105 = vmatpush1.bf16.msra.mxu0 0
        %2106 = vmatprep.mubr.bf16.mxu0 0
        %2107 = vmatmul.mubr.bf16.gmra.mrb[0].mxu0 %v2063
        %v2108 = vpop.f32.mrb[0].mxu0
        %v2109 = vadd.f32 0.0, %v2108
        %v2110 = vpop.f32.mrb[0].mxu0
        %v2111 = vpop.f32.mrb[0].mxu0
        %v2112 = vadd.f32 0.0, %v2111
        %v2113 = vpop.f32.mrb[0].mxu0
        %2114 = vmatprep.mubr.bf16.mxu0 0
        %2115 = vmatmul.mubr.bf16.gmra.mrb[0].mxu0 %v2066
        %v2116 = vpop.f32.mrb[0].mxu0
        %v2117 = vadd.f32 0.0, %v2116
        %v2118 = vpop.f32.mrb[0].mxu0
        %v2119 = vpop.f32.mrb[0].mxu0
        %v2120 = vadd.f32 0.0, %v2119
        %v2121 = vpop.f32.mrb[0].mxu0
        %2122 = vmatprep.mubr.bf16.mxu0 0
        %2123 = vmatmul.mubr.bf16.gmra.mrb[0].mxu0 %v2069
        %v2124 = vpop.f32.mrb[0].mxu0
        %v2125 = vadd.f32 0.0, %v2124
        %v2126 = vpop.f32.mrb[0].mxu0
        %v2127 = vpop.f32.mrb[0].mxu0
        %v2128 = vadd.f32 0.0, %v2127
        %v2129 = vpop.f32.mrb[0].mxu0
        %2130 = vmatprep.mubr.bf16.mxu0 0
        %2131 = vmatmul.mubr.bf16.gmra.mrb[0].mxu0 %v2072
        %v2132 = vpop.f32.mrb[0].mxu0
        %v2133 = vadd.f32 0.0, %v2132
        %v2134 = vpop.f32.mrb[0].mxu0
        %v2135 = vpop.f32.mrb[0].mxu0
        %v2136 = vadd.f32 0.0, %v2135
        %v2137 = vpop.f32.mrb[0].mxu0
        %2138 = vdwg.mxu0
        %v2139 = vmax.f32 %v2109, 0.0
        %v2140 = vmax.f32 %v2112, 0.0
        %v2141 = vmax.f32 %v2117, 0.0
        %v2142 = vmax.f32 %v2120, 0.0
        %v2143 = vmax.f32 %v2125, 0.0
        %v2144 = vmax.f32 %v2128, 0.0
        %v2145 = vmax.f32 %v2133, 0.0
        %v2146 = vmax.f32 %v2136, 0.0
        %v2147 = vpack.c.bf16 %v2139, %v2139
        %v2148 = vpack.c.bf16 %v2140, %v2140
        %v2149 = vpack.c.bf16 %v2141, %v2141
        %v2150 = vpack.c.bf16 %v2142, %v2142
        %v2151 = vpack.c.bf16 %v2143, %v2143
        %v2152 = vpack.c.bf16 %v2144, %v2144
        %v2153 = vpack.c.bf16 %v2145, %v2145
        %v2154 = vpack.c.bf16 %v2146, %v2146
        %vm2155 = vcmask 60416
        %2156 = vst.msk [vmem:[%s242] sm:$0xf] %vm2155, %v2147
        %2157 = vst.msk [vmem:[%s242 + $0x4] sm:$0xf] %vm2155, %v2148
        %2158 = vst.msk [vmem:[%s242 + $0x8] sm:$0xf] %vm2155, %v2149
        %2159 = vst.msk [vmem:[%s242 + $0xc] sm:$0xf] %vm2155, %v2150
        %2160 = vst.msk [vmem:[%s242 + $0x10] sm:$0xf] %vm2155, %v2151
        %2161 = vst.msk [vmem:[%s242 + $0x14] sm:$0xf] %vm2155, %v2152
        %2162 = vst.msk [vmem:[%s242 + $0x18] sm:$0xf] %vm2155, %v2153
        %2163 = vst.msk [vmem:[%s242 + $0x1c] sm:$0xf] %vm2155, %v2154
        %s2164 = sand.u32 %s140, 1
        %s2165 = scalar_lea.sflag [#allocation4], %s2164
        %s2166 = sand.u32 %s140, 1
        %s2167 = smul.addr %s2166, 32
        %s2168 = scalar_lea.vmem [#allocation5], %s2167
        // Predicated region
        $region45: #{tpu_custom_call.1} parent=39 // pred_check
          %p2169 = pneg %p150
        $region46: #{tpu_custom_call.1} parent=39 // pred_check_branch
          %2171 = sbr.rel (%p2169) target = $region48
        $region47: #{tpu_custom_call.1} parent=39 // pred_region
          %s2173 = ssub.s32 512, 512
          %2174 = vsyncadd %s2165, %s2173
          %s2175 = smul.addr %s22, 8
          %s2176 = smul.addr %s2175, 64
          %s2177 = scalar_lea.hbm %s5, %s2176
          %s2178 = sshll.u32 %s2168, 4
          %s2179 = int_to_ptr.vmem [resolvable:$true] %s2178
          %2184 = dma.vmem_to_hbm [thread:$0]  %s2179, 512, %s2177, %s2165, 64, 64, 4
        $region48: #{tpu_custom_call.1} parent=39 // pred_fallthru
          _
      $region40: #{tpu_custom_call.1} parent=5 // pred_fallthru
        _
      %p2185 = scmp.le.s32.totalorder 2, %s17
      // Predicated region
      $region49: #{tpu_custom_call.1} parent=5 // pred_check
        %p2186 = pneg %p2185
      $region50: #{tpu_custom_call.1} parent=5 // pred_check_branch
        %2188 = sbr.rel (%p2186) target = $region52
      $region51: #{tpu_custom_call.1} parent=5 // pred_region
        %s2189 = ssub.s32 %s17, 2
        // Predicated region
        $region53: #{tpu_custom_call.1} parent=51 // pred_check
          %p2190 = pneg %p156
        $region54: #{tpu_custom_call.1} parent=51 // pred_check_branch
          %2192 = sbr.rel (%p2190) target = $region56
        $region55: #{tpu_custom_call.1} parent=51 // pred_region
          %s2193 = sand.u32 %s141, 1
          %s2194 = scalar_lea.sflag [#allocation4], %s2193
          %s2195 = sand.u32 %s141, 1
          %s2196 = smul.addr %s2195, 32
          %s2197 = scalar_lea.vmem [#allocation5], %s2196
          %2198 = dma.done %s2194, 512
        $region56: #{tpu_custom_call.1} parent=51 // pred_fallthru
          _
      $region52: #{tpu_custom_call.1} parent=5 // pred_fallthru
        _
    $region6: #{tpu_custom_call.1} parent=1 // loop_footer
      %s21 = sadd.s32 1, %s17
    $region7: #{tpu_custom_call.1} parent=1 // loop_footer_branch
      %16 = sbr.rel target = $region3
    $region8: #{tpu_custom_call.1} parent=1 // loop_exit
      _
    %2199 = vsyncpa [#allocation3], 1
    %s2200 = scalar_lea.sflag [#allocation3], 1
    %2201 = vsyncpa %s2200, 1
    %2202 = vsyncpa [#allocation4], 1
    %s2203 = scalar_lea.sflag [#allocation4], 1
    %2204 = vsyncpa %s2203, 1

</llo_original>
